<compile_context>
chip_gen: v7x
topology: tpu7x:2x2x1
jax: 0.10.0
libtpu: 0.0.40
codegen_flags: <defaults>
</compile_context>

<pallas_src>
import jax
import jax.numpy as jnp
from jax import lax
from jax.experimental import pallas as pl
from jax.experimental.pallas import tpu as pltpu  # noqa: F401  (TPU backend)

# ---- small, shape-consistent hyperparameters (mirroring the module layout) --
EMBED_DIM = 128
NUM_HEAD = 4
QK_DIM = EMBED_DIM // NUM_HEAD        # 32
V_DIM = EMBED_DIM // NUM_HEAD         # 32
OUT_DIM = EMBED_DIM                   # 128
BATCH = 2
SEQ_LEN = 16
KERNEL_SIZE = 1
STRIDE = 1
SCALE = 1.0 / (QK_DIM ** 0.5)


# ----------------------------- Pallas kernel --------------------------------
def _mha_kernel(x_ref, wq_ref, bq_ref, wk_ref, bk_ref, wv_ref, bv_ref,
                wo_ref, bo_ref, o_ref):
    """Single invocation; every operand is fully resident in VMEM.

    x_ref : (B*L, E)     flattened channels-last activations
    w*_ref: (E, H*d)     1x1-conv weights as matmuls;  b*_ref: (1, H*d)
    wo_ref: (H*dv, out); bo_ref: (1, out)
    o_ref : (B*L, out)
    """
    x = x_ref[...]                                                    # (B*L, E)

    # q/k/v projections: one (B*L, E) @ (E, H*d) MXU matmul each.
    q = jnp.dot(x, wq_ref[...], preferred_element_type=jnp.float32) + bq_ref[...]
    k = jnp.dot(x, wk_ref[...], preferred_element_type=jnp.float32) + bk_ref[...]
    v = jnp.dot(x, wv_ref[...], preferred_element_type=jnp.float32) + bv_ref[...]

    # Static B*H = 8 loop.  Attention must not mix batches, so rows are sliced
    # per batch (sublane slices, multiples of 8); heads are 32-lane slices.
    nt_dims = (((1,), (1,)), ((), ()))        # contract last dims: q_h @ k_h^T
    for b in range(BATCH):
        r0 = b * SEQ_LEN
        acc = jnp.zeros((SEQ_LEN, OUT_DIM), jnp.float32)
        for h in range(NUM_HEAD):
            qh = q[r0:r0 + SEQ_LEN, h * QK_DIM:(h + 1) * QK_DIM]      # (L, dk)
            kh = k[r0:r0 + SEQ_LEN, h * QK_DIM:(h + 1) * QK_DIM]      # (L, dk)
            vh = v[r0:r0 + SEQ_LEN, h * V_DIM:(h + 1) * V_DIM]        # (L, dv)

            # scores: no explicit kh.T — feed the MXU the transposed operand
            # via dot_general dimension numbers.
            s = lax.dot_general(qh, kh, nt_dims,
                                preferred_element_type=jnp.float32) * SCALE
            s = s - jnp.max(s, axis=-1, keepdims=True)
            e = jnp.exp(s)
            denom = jnp.sum(e, axis=-1, keepdims=True)
            # reciprocal + multiply instead of a lane-wise divide.  approx=True
            # would push it fully onto the EUP but would loosen the tightened
            # self-test tolerance, so exact mode is used.
            p = e * pl.reciprocal(denom, approx=False)                # (L, L)

            hv = jnp.dot(p, vh, preferred_element_type=jnp.float32)   # (L, dv)
            # Per-head contribution of the output 1x1 conv: row-slice of Wo
            # (sublane slice, multiple of 8) and accumulate — no lane-axis
            # head concatenation; output stays 128-lane dense.
            acc = acc + jnp.dot(hv, wo_ref[h * V_DIM:(h + 1) * V_DIM, :],
                                preferred_element_type=jnp.float32)
        o_ref[r0:r0 + SEQ_LEN, :] = acc + bo_ref[...]                 # bo once


# ------------------------------- wrapper -------------------------------------
@jax.jit
def my_multi_head_attention(x_ncl, params):
    """x_ncl: (B, embed_dim, L) float32 (PyTorch NCL).  Returns (B, out_dim, L)."""
    B, C, L = x_ncl.shape
    assert (B, C, L) == (BATCH, EMBED_DIM, SEQ_LEN)

    # NCL -> NLC -> flatten rows.  Under jit these fuse with neighbouring ops
    # rather than launching standalone transpose kernels.
    x_flat = jnp.transpose(x_ncl, (0, 2, 1)).reshape(B * L, C)        # (B*L, E)

    # Conv1d(k=1) weights (C_out, C_in, 1) -> matmul weights (C_in, C_out).
    wq_t = jnp.transpose(params["wq"][:, :, 0])                       # (E, H*dk)
    wk_t = jnp.transpose(params["wk"][:, :, 0])
    wv_t = jnp.transpose(params["wv"][:, :, 0])                       # (E, H*dv)
    wo_t = jnp.transpose(params["wo"][:, :, 0])                       # (H*dv, out)
    bq = params["bq"].reshape(1, -1)
    bk = params["bk"].reshape(1, -1)
    bv = params["bv"].reshape(1, -1)
    bo = params["bo"].reshape(1, -1)

    # Single-invocation pallas_call (no grid): total footprint ~0.3 MiB, so
    # every operand lives fully in VMEM on v5e/v6e/v7x; no pipelining,
    # no double-buffering, no per-step overhead.
    out_flat = pl.pallas_call(
        _mha_kernel,
        out_shape=jax.ShapeDtypeStruct((B * L, OUT_DIM), jnp.float32),
    )(x_flat, wq_t, bq, wk_t, bk, wv_t, bv, wo_t, bo)

    return jnp.transpose(out_flat.reshape(B, L, OUT_DIM), (0, 2, 1))  # back to NCL


# ------------------------- parameter initialization -------------------------
def init_params(key):
    """Deterministic Conv1d-style init: U(-1/sqrt(fan_in), 1/sqrt(fan_in))."""
    def conv_init(k, c_out, c_in, ksize):
        kw, kb = jax.random.split(k)
        bound = 1.0 / (c_in * ksize) ** 0.5
        w = jax.random.uniform(kw, (c_out, c_in, ksize), jnp.float32, -bound, bound)
        b = jax.random.uniform(kb, (c_out,), jnp.float32, -bound, bound)
        return w, b

    kq, kk, kv, ko = jax.random.split(key, 4)
    wq, bq = conv_init(kq, QK_DIM * NUM_HEAD, EMBED_DIM, KERNEL_SIZE)
    wk, bk = conv_init(kk, QK_DIM * NUM_HEAD, EMBED_DIM, KERNEL_SIZE)
    wv, bv = conv_init(kv, V_DIM * NUM_HEAD, EMBED_DIM, KERNEL_SIZE)
    wo, bo = conv_init(ko, OUT_DIM, V_DIM * NUM_HEAD, 1)
    return dict(wq=wq, bq=bq, wk=wk, bk=bk, wv=wv, bv=bv, wo=wo, bo=bo)


# -------------------------- pure-JAX reference check -------------------------
def reference_forward(x, p, precision):
    """Literal transcription of MyMultiHeadAttention.forward (kernel_size=1)."""
    def conv1x1(inp, w, b):
        return (jnp.einsum("oi,bil->bol", w[:, :, 0], inp, precision=precision)
                + b[None, :, None])

    B, _, L = x.shape
    q = conv1x1(x, p["wq"], p["bq"])
    k = conv1x1(x, p["wk"], p["bk"])
    v = conv1x1(x, p["wv"], p["bv"])
    q = q.reshape(B, NUM_HEAD, QK_DIM // KERNEL_SIZE, L).transpose(0, 1, 3, 2)
    k = k.reshape(B, NUM_HEAD, QK_DIM // KERNEL_SIZE, L)
    v = v.reshape(B, NUM_HEAD, V_DIM // KERNEL_SIZE, L).transpose(0, 1, 3, 2)
    dot = jnp.matmul(q, k, precision=precision) * SCALE
    attn = jax.nn.softmax(dot, axis=-1)
    o = jnp.matmul(attn, v, precision=precision)
    o = o.transpose(0, 1, 3, 2).reshape(B, V_DIM * NUM_HEAD, L)
    return conv1x1(o, p["wo"], p["bo"])


if __name__ == "__main__":
    key = jax.random.PRNGKey(0)
    k_x, k_p = jax.random.split(key)
    x = jax.random.uniform(k_x, (BATCH, EMBED_DIM, SEQ_LEN), jnp.float32, -1.0, 1.0)
    params = init_params(k_p)

    out = jax.block_until_ready(my_multi_head_attention(x, params))
    assert out.shape == (BATCH, OUT_DIM, SEQ_LEN), out.shape

    # Gold reference at HIGHEST precision.  Tolerance: 1e-5 floor (tight f32
    # check, per review) auto-widened by 10x the platform's measured f32-matmul
    # emulation spread (TPU DEFAULT = bf16 pass, HIGH = bf16x3 passes), so the
    # test is as tight as the hardware path allows while never flaking on MXU
    # pass-count differences.  Any layout/ordering bug shows up at O(1e-1).
    ref_hi = jax.block_until_ready(
        reference_forward(x, params, lax.Precision.HIGHEST))
    spread = max(
        float(jnp.max(jnp.abs(ref_hi - reference_forward(x, params,
                                                         lax.Precision.DEFAULT)))),
        float(jnp.max(jnp.abs(ref_hi - reference_forward(x, params,
                                                         lax.Precision.HIGH)))),
    )
    tol = max(1e-5, 10.0 * spread)
    max_err = float(jnp.max(jnp.abs(out - ref_hi)))
    assert max_err < tol, f"mismatch vs reference: {max_err} (tol {tol})"

    print("KERNEL_OK")
</pallas_src>

<mosaic_0001>
module attributes {stable_mosaic.version = 11 : i64} {
  func.func @_mha_kernel(%arg0: memref<32x128xf32, #tpu.memory_space<vmem>>, %arg1: memref<128x128xf32, #tpu.memory_space<vmem>>, %arg2: memref<1x128xf32, #tpu.memory_space<vmem>>, %arg3: memref<128x128xf32, #tpu.memory_space<vmem>>, %arg4: memref<1x128xf32, #tpu.memory_space<vmem>>, %arg5: memref<128x128xf32, #tpu.memory_space<vmem>>, %arg6: memref<1x128xf32, #tpu.memory_space<vmem>>, %arg7: memref<128x128xf32, #tpu.memory_space<vmem>>, %arg8: memref<1x128xf32, #tpu.memory_space<vmem>>, %arg9: memref<32x128xf32, #tpu.memory_space<vmem>>) attributes {dimension_semantics = [], scalar_prefetch = 0 : i64, scratch_operands = 0 : i64, tpu.core_type = #tpu.core_type<tc>} {
    %c0 = arith.constant 0 : index
    %c0_0 = arith.constant 0 : index
    %0 = vector.load %arg0[%c0, %c0_0] : memref<32x128xf32, #tpu.memory_space<vmem>>, vector<32x128xf32>
    %c0_1 = arith.constant 0 : index
    %c0_2 = arith.constant 0 : index
    %1 = vector.load %arg1[%c0_1, %c0_2] : memref<128x128xf32, #tpu.memory_space<vmem>>, vector<128x128xf32>
    %cst = arith.constant dense<0.000000e+00> : vector<32x128xf32>
    %2 = tpu.matmul %0, %1, %cst {dimension_numbers = #tpu.dot_dimension_numbers<[1], [0], [0], [1], [0, 0, 1, 1], [], []>} : vector<32x128xf32>, vector<128x128xf32>, vector<32x128xf32> -> vector<32x128xf32>
    %c0_3 = arith.constant 0 : index
    %c0_4 = arith.constant 0 : index
    %3 = vector.load %arg2[%c0_3, %c0_4] : memref<1x128xf32, #tpu.memory_space<vmem>>, vector<1x128xf32>
    %4 = vector.broadcast %3 : vector<1x128xf32> to vector<32x128xf32>
    %5 = arith.addf %2, %4 : vector<32x128xf32>
    %c0_5 = arith.constant 0 : index
    %c0_6 = arith.constant 0 : index
    %6 = vector.load %arg3[%c0_5, %c0_6] : memref<128x128xf32, #tpu.memory_space<vmem>>, vector<128x128xf32>
    %cst_7 = arith.constant dense<0.000000e+00> : vector<32x128xf32>
    %7 = tpu.matmul %0, %6, %cst_7 {dimension_numbers = #tpu.dot_dimension_numbers<[1], [0], [0], [1], [0, 0, 1, 1], [], []>} : vector<32x128xf32>, vector<128x128xf32>, vector<32x128xf32> -> vector<32x128xf32>
    %c0_8 = arith.constant 0 : index
    %c0_9 = arith.constant 0 : index
    %8 = vector.load %arg4[%c0_8, %c0_9] : memref<1x128xf32, #tpu.memory_space<vmem>>, vector<1x128xf32>
    %9 = vector.broadcast %8 : vector<1x128xf32> to vector<32x128xf32>
    %10 = arith.addf %7, %9 : vector<32x128xf32>
    %c0_10 = arith.constant 0 : index
    %c0_11 = arith.constant 0 : index
    %11 = vector.load %arg5[%c0_10, %c0_11] : memref<128x128xf32, #tpu.memory_space<vmem>>, vector<128x128xf32>
    %cst_12 = arith.constant dense<0.000000e+00> : vector<32x128xf32>
    %12 = tpu.matmul %0, %11, %cst_12 {dimension_numbers = #tpu.dot_dimension_numbers<[1], [0], [0], [1], [0, 0, 1, 1], [], []>} : vector<32x128xf32>, vector<128x128xf32>, vector<32x128xf32> -> vector<32x128xf32>
    %c0_13 = arith.constant 0 : index
    %c0_14 = arith.constant 0 : index
    %13 = vector.load %arg6[%c0_13, %c0_14] : memref<1x128xf32, #tpu.memory_space<vmem>>, vector<1x128xf32>
    %14 = vector.broadcast %13 : vector<1x128xf32> to vector<32x128xf32>
    %15 = arith.addf %12, %14 : vector<32x128xf32>
    %cst_15 = arith.constant 0.000000e+00 : f32
    %16 = vector.broadcast %cst_15 : f32 to vector<16x128xf32>
    %17 = vector.extract_strided_slice %5 {offsets = [0, 0], sizes = [16, 32], strides = [1, 1]} : vector<32x128xf32> to vector<16x32xf32>
    %18 = vector.extract_strided_slice %10 {offsets = [0, 0], sizes = [16, 32], strides = [1, 1]} : vector<32x128xf32> to vector<16x32xf32>
    %19 = vector.extract_strided_slice %15 {offsets = [0, 0], sizes = [16, 32], strides = [1, 1]} : vector<32x128xf32> to vector<16x32xf32>
    %cst_16 = arith.constant dense<0.000000e+00> : vector<16x16xf32>
    %20 = tpu.matmul %17, %18, %cst_16 {dimension_numbers = #tpu.dot_dimension_numbers<[1], [1], [0], [0], [0, 0, 1, 0], [], []>} : vector<16x32xf32>, vector<16x32xf32>, vector<16x16xf32> -> vector<16x16xf32>
    %cst_17 = arith.constant 0.176776692 : f32
    %21 = vector.broadcast %cst_17 : f32 to vector<16x16xf32>
    %22 = arith.mulf %20, %21 : vector<16x16xf32>
    %cst_18 = arith.constant dense<0xFF800000> : vector<16xf32>
    %23 = vector.multi_reduction <maximumf>, %22, %cst_18 [1] : vector<16x16xf32> to vector<16xf32>
    %24 = vector.shape_cast %23 : vector<16xf32> to vector<16x1xf32>
    %25 = vector.broadcast %24 : vector<16x1xf32> to vector<16x16xf32>
    %26 = arith.subf %22, %25 : vector<16x16xf32>
    %27 = math.exp %26 : vector<16x16xf32>
    %cst_19 = arith.constant dense<0.000000e+00> : vector<16xf32>
    %28 = vector.multi_reduction <add>, %27, %cst_19 [1] : vector<16x16xf32> to vector<16xf32>
    %29 = vector.shape_cast %28 : vector<16xf32> to vector<16x1xf32>
    %30 = tpu.reciprocal %29 : vector<16x1xf32> -> vector<16x1xf32>
    %31 = vector.broadcast %30 : vector<16x1xf32> to vector<16x16xf32>
    %32 = arith.mulf %27, %31 : vector<16x16xf32>
    %cst_20 = arith.constant dense<0.000000e+00> : vector<16x32xf32>
    %33 = tpu.matmul %32, %19, %cst_20 {dimension_numbers = #tpu.dot_dimension_numbers<[1], [0], [0], [1], [0, 0, 1, 1], [], []>} : vector<16x16xf32>, vector<16x32xf32>, vector<16x32xf32> -> vector<16x32xf32>
    %c0_21 = arith.constant 0 : index
    %c0_22 = arith.constant 0 : index
    %34 = vector.load %arg7[%c0_21, %c0_22] : memref<128x128xf32, #tpu.memory_space<vmem>>, vector<32x128xf32>
    %cst_23 = arith.constant dense<0.000000e+00> : vector<16x128xf32>
    %35 = tpu.matmul %33, %34, %cst_23 {dimension_numbers = #tpu.dot_dimension_numbers<[1], [0], [0], [1], [0, 0, 1, 1], [], []>} : vector<16x32xf32>, vector<32x128xf32>, vector<16x128xf32> -> vector<16x128xf32>
    %36 = arith.addf %16, %35 : vector<16x128xf32>
    %37 = vector.extract_strided_slice %5 {offsets = [0, 32], sizes = [16, 32], strides = [1, 1]} : vector<32x128xf32> to vector<16x32xf32>
    %38 = vector.extract_strided_slice %10 {offsets = [0, 32], sizes = [16, 32], strides = [1, 1]} : vector<32x128xf32> to vector<16x32xf32>
    %39 = vector.extract_strided_slice %15 {offsets = [0, 32], sizes = [16, 32], strides = [1, 1]} : vector<32x128xf32> to vector<16x32xf32>
    %cst_24 = arith.constant dense<0.000000e+00> : vector<16x16xf32>
    %40 = tpu.matmul %37, %38, %cst_24 {dimension_numbers = #tpu.dot_dimension_numbers<[1], [1], [0], [0], [0, 0, 1, 0], [], []>} : vector<16x32xf32>, vector<16x32xf32>, vector<16x16xf32> -> vector<16x16xf32>
    %cst_25 = arith.constant 0.176776692 : f32
    %41 = vector.broadcast %cst_25 : f32 to vector<16x16xf32>
    %42 = arith.mulf %40, %41 : vector<16x16xf32>
    %cst_26 = arith.constant dense<0xFF800000> : vector<16xf32>
    %43 = vector.multi_reduction <maximumf>, %42, %cst_26 [1] : vector<16x16xf32> to vector<16xf32>
    %44 = vector.shape_cast %43 : vector<16xf32> to vector<16x1xf32>
    %45 = vector.broadcast %44 : vector<16x1xf32> to vector<16x16xf32>
    %46 = arith.subf %42, %45 : vector<16x16xf32>
    %47 = math.exp %46 : vector<16x16xf32>
    %cst_27 = arith.constant dense<0.000000e+00> : vector<16xf32>
    %48 = vector.multi_reduction <add>, %47, %cst_27 [1] : vector<16x16xf32> to vector<16xf32>
    %49 = vector.shape_cast %48 : vector<16xf32> to vector<16x1xf32>
    %50 = tpu.reciprocal %49 : vector<16x1xf32> -> vector<16x1xf32>
    %51 = vector.broadcast %50 : vector<16x1xf32> to vector<16x16xf32>
    %52 = arith.mulf %47, %51 : vector<16x16xf32>
    %cst_28 = arith.constant dense<0.000000e+00> : vector<16x32xf32>
    %53 = tpu.matmul %52, %39, %cst_28 {dimension_numbers = #tpu.dot_dimension_numbers<[1], [0], [0], [1], [0, 0, 1, 1], [], []>} : vector<16x16xf32>, vector<16x32xf32>, vector<16x32xf32> -> vector<16x32xf32>
    %c32 = arith.constant 32 : index
    %c0_29 = arith.constant 0 : index
    %54 = vector.load %arg7[%c32, %c0_29] : memref<128x128xf32, #tpu.memory_space<vmem>>, vector<32x128xf32>
    %cst_30 = arith.constant dense<0.000000e+00> : vector<16x128xf32>
    %55 = tpu.matmul %53, %54, %cst_30 {dimension_numbers = #tpu.dot_dimension_numbers<[1], [0], [0], [1], [0, 0, 1, 1], [], []>} : vector<16x32xf32>, vector<32x128xf32>, vector<16x128xf32> -> vector<16x128xf32>
    %56 = arith.addf %36, %55 : vector<16x128xf32>
    %57 = vector.extract_strided_slice %5 {offsets = [0, 64], sizes = [16, 32], strides = [1, 1]} : vector<32x128xf32> to vector<16x32xf32>
    %58 = vector.extract_strided_slice %10 {offsets = [0, 64], sizes = [16, 32], strides = [1, 1]} : vector<32x128xf32> to vector<16x32xf32>
    %59 = vector.extract_strided_slice %15 {offsets = [0, 64], sizes = [16, 32], strides = [1, 1]} : vector<32x128xf32> to vector<16x32xf32>
    %cst_31 = arith.constant dense<0.000000e+00> : vector<16x16xf32>
    %60 = tpu.matmul %57, %58, %cst_31 {dimension_numbers = #tpu.dot_dimension_numbers<[1], [1], [0], [0], [0, 0, 1, 0], [], []>} : vector<16x32xf32>, vector<16x32xf32>, vector<16x16xf32> -> vector<16x16xf32>
    %cst_32 = arith.constant 0.176776692 : f32
    %61 = vector.broadcast %cst_32 : f32 to vector<16x16xf32>
    %62 = arith.mulf %60, %61 : vector<16x16xf32>
    %cst_33 = arith.constant dense<0xFF800000> : vector<16xf32>
    %63 = vector.multi_reduction <maximumf>, %62, %cst_33 [1] : vector<16x16xf32> to vector<16xf32>
    %64 = vector.shape_cast %63 : vector<16xf32> to vector<16x1xf32>
    %65 = vector.broadcast %64 : vector<16x1xf32> to vector<16x16xf32>
    %66 = arith.subf %62, %65 : vector<16x16xf32>
    %67 = math.exp %66 : vector<16x16xf32>
    %cst_34 = arith.constant dense<0.000000e+00> : vector<16xf32>
    %68 = vector.multi_reduction <add>, %67, %cst_34 [1] : vector<16x16xf32> to vector<16xf32>
    %69 = vector.shape_cast %68 : vector<16xf32> to vector<16x1xf32>
    %70 = tpu.reciprocal %69 : vector<16x1xf32> -> vector<16x1xf32>
    %71 = vector.broadcast %70 : vector<16x1xf32> to vector<16x16xf32>
    %72 = arith.mulf %67, %71 : vector<16x16xf32>
    %cst_35 = arith.constant dense<0.000000e+00> : vector<16x32xf32>
    %73 = tpu.matmul %72, %59, %cst_35 {dimension_numbers = #tpu.dot_dimension_numbers<[1], [0], [0], [1], [0, 0, 1, 1], [], []>} : vector<16x16xf32>, vector<16x32xf32>, vector<16x32xf32> -> vector<16x32xf32>
    %c64 = arith.constant 64 : index
    %c0_36 = arith.constant 0 : index
    %74 = vector.load %arg7[%c64, %c0_36] : memref<128x128xf32, #tpu.memory_space<vmem>>, vector<32x128xf32>
    %cst_37 = arith.constant dense<0.000000e+00> : vector<16x128xf32>
    %75 = tpu.matmul %73, %74, %cst_37 {dimension_numbers = #tpu.dot_dimension_numbers<[1], [0], [0], [1], [0, 0, 1, 1], [], []>} : vector<16x32xf32>, vector<32x128xf32>, vector<16x128xf32> -> vector<16x128xf32>
    %76 = arith.addf %56, %75 : vector<16x128xf32>
    %77 = vector.extract_strided_slice %5 {offsets = [0, 96], sizes = [16, 32], strides = [1, 1]} : vector<32x128xf32> to vector<16x32xf32>
    %78 = vector.extract_strided_slice %10 {offsets = [0, 96], sizes = [16, 32], strides = [1, 1]} : vector<32x128xf32> to vector<16x32xf32>
    %79 = vector.extract_strided_slice %15 {offsets = [0, 96], sizes = [16, 32], strides = [1, 1]} : vector<32x128xf32> to vector<16x32xf32>
    %cst_38 = arith.constant dense<0.000000e+00> : vector<16x16xf32>
    %80 = tpu.matmul %77, %78, %cst_38 {dimension_numbers = #tpu.dot_dimension_numbers<[1], [1], [0], [0], [0, 0, 1, 0], [], []>} : vector<16x32xf32>, vector<16x32xf32>, vector<16x16xf32> -> vector<16x16xf32>
    %cst_39 = arith.constant 0.176776692 : f32
    %81 = vector.broadcast %cst_39 : f32 to vector<16x16xf32>
    %82 = arith.mulf %80, %81 : vector<16x16xf32>
    %cst_40 = arith.constant dense<0xFF800000> : vector<16xf32>
    %83 = vector.multi_reduction <maximumf>, %82, %cst_40 [1] : vector<16x16xf32> to vector<16xf32>
    %84 = vector.shape_cast %83 : vector<16xf32> to vector<16x1xf32>
    %85 = vector.broadcast %84 : vector<16x1xf32> to vector<16x16xf32>
    %86 = arith.subf %82, %85 : vector<16x16xf32>
    %87 = math.exp %86 : vector<16x16xf32>
    %cst_41 = arith.constant dense<0.000000e+00> : vector<16xf32>
    %88 = vector.multi_reduction <add>, %87, %cst_41 [1] : vector<16x16xf32> to vector<16xf32>
    %89 = vector.shape_cast %88 : vector<16xf32> to vector<16x1xf32>
    %90 = tpu.reciprocal %89 : vector<16x1xf32> -> vector<16x1xf32>
    %91 = vector.broadcast %90 : vector<16x1xf32> to vector<16x16xf32>
    %92 = arith.mulf %87, %91 : vector<16x16xf32>
    %cst_42 = arith.constant dense<0.000000e+00> : vector<16x32xf32>
    %93 = tpu.matmul %92, %79, %cst_42 {dimension_numbers = #tpu.dot_dimension_numbers<[1], [0], [0], [1], [0, 0, 1, 1], [], []>} : vector<16x16xf32>, vector<16x32xf32>, vector<16x32xf32> -> vector<16x32xf32>
    %c96 = arith.constant 96 : index
    %c0_43 = arith.constant 0 : index
    %94 = vector.load %arg7[%c96, %c0_43] : memref<128x128xf32, #tpu.memory_space<vmem>>, vector<32x128xf32>
    %cst_44 = arith.constant dense<0.000000e+00> : vector<16x128xf32>
    %95 = tpu.matmul %93, %94, %cst_44 {dimension_numbers = #tpu.dot_dimension_numbers<[1], [0], [0], [1], [0, 0, 1, 1], [], []>} : vector<16x32xf32>, vector<32x128xf32>, vector<16x128xf32> -> vector<16x128xf32>
    %96 = arith.addf %76, %95 : vector<16x128xf32>
    %c0_45 = arith.constant 0 : index
    %c0_46 = arith.constant 0 : index
    %97 = vector.load %arg8[%c0_45, %c0_46] : memref<1x128xf32, #tpu.memory_space<vmem>>, vector<1x128xf32>
    %98 = vector.broadcast %97 : vector<1x128xf32> to vector<16x128xf32>
    %99 = arith.addf %96, %98 : vector<16x128xf32>
    %c0_47 = arith.constant 0 : index
    %c0_48 = arith.constant 0 : index
    %100 = vector.load %arg9[%c0_47, %c0_48] : memref<32x128xf32, #tpu.memory_space<vmem>>, vector<16x128xf32>
    tpu.vector_store %arg9[%c0_47, %c0_48], %99 {strides = array<i32>} : memref<32x128xf32, #tpu.memory_space<vmem>>, vector<16x128xf32>,
    %cst_49 = arith.constant 0.000000e+00 : f32
    %101 = vector.broadcast %cst_49 : f32 to vector<16x128xf32>
    %102 = vector.extract_strided_slice %5 {offsets = [16, 0], sizes = [16, 32], strides = [1, 1]} : vector<32x128xf32> to vector<16x32xf32>
    %103 = vector.extract_strided_slice %10 {offsets = [16, 0], sizes = [16, 32], strides = [1, 1]} : vector<32x128xf32> to vector<16x32xf32>
    %104 = vector.extract_strided_slice %15 {offsets = [16, 0], sizes = [16, 32], strides = [1, 1]} : vector<32x128xf32> to vector<16x32xf32>
    %cst_50 = arith.constant dense<0.000000e+00> : vector<16x16xf32>
    %105 = tpu.matmul %102, %103, %cst_50 {dimension_numbers = #tpu.dot_dimension_numbers<[1], [1], [0], [0], [0, 0, 1, 0], [], []>} : vector<16x32xf32>, vector<16x32xf32>, vector<16x16xf32> -> vector<16x16xf32>
    %cst_51 = arith.constant 0.176776692 : f32
    %106 = vector.broadcast %cst_51 : f32 to vector<16x16xf32>
    %107 = arith.mulf %105, %106 : vector<16x16xf32>
    %cst_52 = arith.constant dense<0xFF800000> : vector<16xf32>
    %108 = vector.multi_reduction <maximumf>, %107, %cst_52 [1] : vector<16x16xf32> to vector<16xf32>
    %109 = vector.shape_cast %108 : vector<16xf32> to vector<16x1xf32>
    %110 = vector.broadcast %109 : vector<16x1xf32> to vector<16x16xf32>
    %111 = arith.subf %107, %110 : vector<16x16xf32>
    %112 = math.exp %111 : vector<16x16xf32>
    %cst_53 = arith.constant dense<0.000000e+00> : vector<16xf32>
    %113 = vector.multi_reduction <add>, %112, %cst_53 [1] : vector<16x16xf32> to vector<16xf32>
    %114 = vector.shape_cast %113 : vector<16xf32> to vector<16x1xf32>
    %115 = tpu.reciprocal %114 : vector<16x1xf32> -> vector<16x1xf32>
    %116 = vector.broadcast %115 : vector<16x1xf32> to vector<16x16xf32>
    %117 = arith.mulf %112, %116 : vector<16x16xf32>
    %cst_54 = arith.constant dense<0.000000e+00> : vector<16x32xf32>
    %118 = tpu.matmul %117, %104, %cst_54 {dimension_numbers = #tpu.dot_dimension_numbers<[1], [0], [0], [1], [0, 0, 1, 1], [], []>} : vector<16x16xf32>, vector<16x32xf32>, vector<16x32xf32> -> vector<16x32xf32>
    %c0_55 = arith.constant 0 : index
    %c0_56 = arith.constant 0 : index
    %119 = vector.load %arg7[%c0_55, %c0_56] : memref<128x128xf32, #tpu.memory_space<vmem>>, vector<32x128xf32>
    %cst_57 = arith.constant dense<0.000000e+00> : vector<16x128xf32>
    %120 = tpu.matmul %118, %119, %cst_57 {dimension_numbers = #tpu.dot_dimension_numbers<[1], [0], [0], [1], [0, 0, 1, 1], [], []>} : vector<16x32xf32>, vector<32x128xf32>, vector<16x128xf32> -> vector<16x128xf32>
    %121 = arith.addf %101, %120 : vector<16x128xf32>
    %122 = vector.extract_strided_slice %5 {offsets = [16, 32], sizes = [16, 32], strides = [1, 1]} : vector<32x128xf32> to vector<16x32xf32>
    %123 = vector.extract_strided_slice %10 {offsets = [16, 32], sizes = [16, 32], strides = [1, 1]} : vector<32x128xf32> to vector<16x32xf32>
    %124 = vector.extract_strided_slice %15 {offsets = [16, 32], sizes = [16, 32], strides = [1, 1]} : vector<32x128xf32> to vector<16x32xf32>
    %cst_58 = arith.constant dense<0.000000e+00> : vector<16x16xf32>
    %125 = tpu.matmul %122, %123, %cst_58 {dimension_numbers = #tpu.dot_dimension_numbers<[1], [1], [0], [0], [0, 0, 1, 0], [], []>} : vector<16x32xf32>, vector<16x32xf32>, vector<16x16xf32> -> vector<16x16xf32>
    %cst_59 = arith.constant 0.176776692 : f32
    %126 = vector.broadcast %cst_59 : f32 to vector<16x16xf32>
    %127 = arith.mulf %125, %126 : vector<16x16xf32>
    %cst_60 = arith.constant dense<0xFF800000> : vector<16xf32>
    %128 = vector.multi_reduction <maximumf>, %127, %cst_60 [1] : vector<16x16xf32> to vector<16xf32>
    %129 = vector.shape_cast %128 : vector<16xf32> to vector<16x1xf32>
    %130 = vector.broadcast %129 : vector<16x1xf32> to vector<16x16xf32>
    %131 = arith.subf %127, %130 : vector<16x16xf32>
    %132 = math.exp %131 : vector<16x16xf32>
    %cst_61 = arith.constant dense<0.000000e+00> : vector<16xf32>
    %133 = vector.multi_reduction <add>, %132, %cst_61 [1] : vector<16x16xf32> to vector<16xf32>
    %134 = vector.shape_cast %133 : vector<16xf32> to vector<16x1xf32>
    %135 = tpu.reciprocal %134 : vector<16x1xf32> -> vector<16x1xf32>
    %136 = vector.broadcast %135 : vector<16x1xf32> to vector<16x16xf32>
    %137 = arith.mulf %132, %136 : vector<16x16xf32>
    %cst_62 = arith.constant dense<0.000000e+00> : vector<16x32xf32>
    %138 = tpu.matmul %137, %124, %cst_62 {dimension_numbers = #tpu.dot_dimension_numbers<[1], [0], [0], [1], [0, 0, 1, 1], [], []>} : vector<16x16xf32>, vector<16x32xf32>, vector<16x32xf32> -> vector<16x32xf32>
    %c32_63 = arith.constant 32 : index
    %c0_64 = arith.constant 0 : index
    %139 = vector.load %arg7[%c32_63, %c0_64] : memref<128x128xf32, #tpu.memory_space<vmem>>, vector<32x128xf32>
    %cst_65 = arith.constant dense<0.000000e+00> : vector<16x128xf32>
    %140 = tpu.matmul %138, %139, %cst_65 {dimension_numbers = #tpu.dot_dimension_numbers<[1], [0], [0], [1], [0, 0, 1, 1], [], []>} : vector<16x32xf32>, vector<32x128xf32>, vector<16x128xf32> -> vector<16x128xf32>
    %141 = arith.addf %121, %140 : vector<16x128xf32>
    %142 = vector.extract_strided_slice %5 {offsets = [16, 64], sizes = [16, 32], strides = [1, 1]} : vector<32x128xf32> to vector<16x32xf32>
    %143 = vector.extract_strided_slice %10 {offsets = [16, 64], sizes = [16, 32], strides = [1, 1]} : vector<32x128xf32> to vector<16x32xf32>
    %144 = vector.extract_strided_slice %15 {offsets = [16, 64], sizes = [16, 32], strides = [1, 1]} : vector<32x128xf32> to vector<16x32xf32>
    %cst_66 = arith.constant dense<0.000000e+00> : vector<16x16xf32>
    %145 = tpu.matmul %142, %143, %cst_66 {dimension_numbers = #tpu.dot_dimension_numbers<[1], [1], [0], [0], [0, 0, 1, 0], [], []>} : vector<16x32xf32>, vector<16x32xf32>, vector<16x16xf32> -> vector<16x16xf32>
    %cst_67 = arith.constant 0.176776692 : f32
    %146 = vector.broadcast %cst_67 : f32 to vector<16x16xf32>
    %147 = arith.mulf %145, %146 : vector<16x16xf32>
    %cst_68 = arith.constant dense<0xFF800000> : vector<16xf32>
    %148 = vector.multi_reduction <maximumf>, %147, %cst_68 [1] : vector<16x16xf32> to vector<16xf32>
    %149 = vector.shape_cast %148 : vector<16xf32> to vector<16x1xf32>
    %150 = vector.broadcast %149 : vector<16x1xf32> to vector<16x16xf32>
    %151 = arith.subf %147, %150 : vector<16x16xf32>
    %152 = math.exp %151 : vector<16x16xf32>
    %cst_69 = arith.constant dense<0.000000e+00> : vector<16xf32>
    %153 = vector.multi_reduction <add>, %152, %cst_69 [1] : vector<16x16xf32> to vector<16xf32>
    %154 = vector.shape_cast %153 : vector<16xf32> to vector<16x1xf32>
    %155 = tpu.reciprocal %154 : vector<16x1xf32> -> vector<16x1xf32>
    %156 = vector.broadcast %155 : vector<16x1xf32> to vector<16x16xf32>
    %157 = arith.mulf %152, %156 : vector<16x16xf32>
    %cst_70 = arith.constant dense<0.000000e+00> : vector<16x32xf32>
    %158 = tpu.matmul %157, %144, %cst_70 {dimension_numbers = #tpu.dot_dimension_numbers<[1], [0], [0], [1], [0, 0, 1, 1], [], []>} : vector<16x16xf32>, vector<16x32xf32>, vector<16x32xf32> -> vector<16x32xf32>
    %c64_71 = arith.constant 64 : index
    %c0_72 = arith.constant 0 : index
    %159 = vector.load %arg7[%c64_71, %c0_72] : memref<128x128xf32, #tpu.memory_space<vmem>>, vector<32x128xf32>
    %cst_73 = arith.constant dense<0.000000e+00> : vector<16x128xf32>
    %160 = tpu.matmul %158, %159, %cst_73 {dimension_numbers = #tpu.dot_dimension_numbers<[1], [0], [0], [1], [0, 0, 1, 1], [], []>} : vector<16x32xf32>, vector<32x128xf32>, vector<16x128xf32> -> vector<16x128xf32>
    %161 = arith.addf %141, %160 : vector<16x128xf32>
    %162 = vector.extract_strided_slice %5 {offsets = [16, 96], sizes = [16, 32], strides = [1, 1]} : vector<32x128xf32> to vector<16x32xf32>
    %163 = vector.extract_strided_slice %10 {offsets = [16, 96], sizes = [16, 32], strides = [1, 1]} : vector<32x128xf32> to vector<16x32xf32>
    %164 = vector.extract_strided_slice %15 {offsets = [16, 96], sizes = [16, 32], strides = [1, 1]} : vector<32x128xf32> to vector<16x32xf32>
    %cst_74 = arith.constant dense<0.000000e+00> : vector<16x16xf32>
    %165 = tpu.matmul %162, %163, %cst_74 {dimension_numbers = #tpu.dot_dimension_numbers<[1], [1], [0], [0], [0, 0, 1, 0], [], []>} : vector<16x32xf32>, vector<16x32xf32>, vector<16x16xf32> -> vector<16x16xf32>
    %cst_75 = arith.constant 0.176776692 : f32
    %166 = vector.broadcast %cst_75 : f32 to vector<16x16xf32>
    %167 = arith.mulf %165, %166 : vector<16x16xf32>
    %cst_76 = arith.constant dense<0xFF800000> : vector<16xf32>
    %168 = vector.multi_reduction <maximumf>, %167, %cst_76 [1] : vector<16x16xf32> to vector<16xf32>
    %169 = vector.shape_cast %168 : vector<16xf32> to vector<16x1xf32>
    %170 = vector.broadcast %169 : vector<16x1xf32> to vector<16x16xf32>
    %171 = arith.subf %167, %170 : vector<16x16xf32>
    %172 = math.exp %171 : vector<16x16xf32>
    %cst_77 = arith.constant dense<0.000000e+00> : vector<16xf32>
    %173 = vector.multi_reduction <add>, %172, %cst_77 [1] : vector<16x16xf32> to vector<16xf32>
    %174 = vector.shape_cast %173 : vector<16xf32> to vector<16x1xf32>
    %175 = tpu.reciprocal %174 : vector<16x1xf32> -> vector<16x1xf32>
    %176 = vector.broadcast %175 : vector<16x1xf32> to vector<16x16xf32>
    %177 = arith.mulf %172, %176 : vector<16x16xf32>
    %cst_78 = arith.constant dense<0.000000e+00> : vector<16x32xf32>
    %178 = tpu.matmul %177, %164, %cst_78 {dimension_numbers = #tpu.dot_dimension_numbers<[1], [0], [0], [1], [0, 0, 1, 1], [], []>} : vector<16x16xf32>, vector<16x32xf32>, vector<16x32xf32> -> vector<16x32xf32>
    %c96_79 = arith.constant 96 : index
    %c0_80 = arith.constant 0 : index
    %179 = vector.load %arg7[%c96_79, %c0_80] : memref<128x128xf32, #tpu.memory_space<vmem>>, vector<32x128xf32>
    %cst_81 = arith.constant dense<0.000000e+00> : vector<16x128xf32>
    %180 = tpu.matmul %178, %179, %cst_81 {dimension_numbers = #tpu.dot_dimension_numbers<[1], [0], [0], [1], [0, 0, 1, 1], [], []>} : vector<16x32xf32>, vector<32x128xf32>, vector<16x128xf32> -> vector<16x128xf32>
    %181 = arith.addf %161, %180 : vector<16x128xf32>
    %c0_82 = arith.constant 0 : index
    %c0_83 = arith.constant 0 : index
    %182 = vector.load %arg8[%c0_82, %c0_83] : memref<1x128xf32, #tpu.memory_space<vmem>>, vector<1x128xf32>
    %183 = vector.broadcast %182 : vector<1x128xf32> to vector<16x128xf32>
    %184 = arith.addf %181, %183 : vector<16x128xf32>
    %c16 = arith.constant 16 : index
    %c0_84 = arith.constant 0 : index
    %185 = vector.load %arg9[%c16, %c0_84] : memref<32x128xf32, #tpu.memory_space<vmem>>, vector<16x128xf32>
    tpu.vector_store %arg9[%c16, %c0_84], %184 {strides = array<i32>} : memref<32x128xf32, #tpu.memory_space<vmem>>, vector<16x128xf32>,
    return
  }
}

</mosaic_0001>

<llo_original>
// kernel: my_multi_head_attention.1
$region0: #{my_multi_head_attention.1}
  #allocation0 [shape = 'u32[]', space=smem, size = 0x4, offset = 0x4, fixed_abs, tag = 'smem constant byte address 0x4 - core index']
  #allocation1 [shape = 'u32[144,128]{1,0:T(1,128)}', space=vmem, size = 0x12000, scoped, tag = 'internal scratch']
  %s0 = inlined_call_operand.vmem [shape: f32[32,128], index: 0, kind: input, shape index: {}]
  %s1 = inlined_call_operand.vmem [shape: f32[128,128], index: 1, kind: input, shape index: {}]
  %s2 = inlined_call_operand.vmem [shape: f32[1,128], index: 2, kind: input, shape index: {}]
  %s3 = inlined_call_operand.vmem [shape: f32[128,128], index: 3, kind: input, shape index: {}]
  %s4 = inlined_call_operand.vmem [shape: f32[1,128], index: 4, kind: input, shape index: {}]
  %s5 = inlined_call_operand.vmem [shape: f32[128,128], index: 5, kind: input, shape index: {}]
  %s6 = inlined_call_operand.vmem [shape: f32[1,128], index: 6, kind: input, shape index: {}]
  %s7 = inlined_call_operand.vmem [shape: f32[128,128], index: 7, kind: input, shape index: {}]
  %s8 = inlined_call_operand.vmem [shape: f32[1,128], index: 8, kind: input, shape index: {}]
  %s9 = inlined_call_operand.hbm [shape: f32[32,128], index: 9, kind: output, shape index: {}]
  %s10 = sld [smem:[#allocation0]]
  $region46: #{my_multi_head_attention.1} parent=0
    _
  %s12 = ssub.s32 1, %s10
  %s13 = scalar_select 0, %s12, %s10
  $region1: #{my_multi_head_attention.1} parent=0
    #allocation2 [shape = 'u8[16384]{0}', space=vmem, size = 0x4000, scoped, tag = 'output window, operand 0, single buffered']
    #allocation3 [shape = 's32[1]{0}', space=sflag, size = 0x4, scoped, tag = 'scoped memory for my_multi_head_attention.1']
    %14 = vsyncpa [#allocation3], 0
    // Predicated region
    $region2: #{my_multi_head_attention.1} parent=1 // pred_check
      _
    $region3: #{my_multi_head_attention.1} parent=1 // pred_check_branch
      %16 = sbr.rel (0) target = $region5
    $region4: #{my_multi_head_attention.1} parent=1 // pred_region
      _
    $region5: #{my_multi_head_attention.1} parent=1 // pred_fallthru
      _
    // Predicated region
    $region6: #{my_multi_head_attention.1} parent=1 // pred_check
      _
    $region7: #{my_multi_head_attention.1} parent=1 // pred_check_branch
      %18 = sbr.rel (0) target = $region9
    $region8: #{my_multi_head_attention.1} parent=1 // pred_region
      _
    $region9: #{my_multi_head_attention.1} parent=1 // pred_fallthru
      _
    // Predicated region
    $region10: #{my_multi_head_attention.1} parent=1 // pred_check
      _
    $region11: #{my_multi_head_attention.1} parent=1 // pred_check_branch
      %20 = sbr.rel (0) target = $region13
    $region12: #{my_multi_head_attention.1} parent=1 // pred_region
      _
    $region13: #{my_multi_head_attention.1} parent=1 // pred_fallthru
      _
    // Predicated region
    $region14: #{my_multi_head_attention.1} parent=1 // pred_check
      _
    $region15: #{my_multi_head_attention.1} parent=1 // pred_check_branch
      %22 = sbr.rel (0) target = $region17
    $region16: #{my_multi_head_attention.1} parent=1 // pred_region
      _
    $region17: #{my_multi_head_attention.1} parent=1 // pred_fallthru
      _
    // Predicated region
    $region18: #{my_multi_head_attention.1} parent=1 // pred_check
      _
    $region19: #{my_multi_head_attention.1} parent=1 // pred_check_branch
      %24 = sbr.rel (0) target = $region21
    $region20: #{my_multi_head_attention.1} parent=1 // pred_region
      _
    $region21: #{my_multi_head_attention.1} parent=1 // pred_fallthru
      _
    // Predicated region
    $region22: #{my_multi_head_attention.1} parent=1 // pred_check
      _
    $region23: #{my_multi_head_attention.1} parent=1 // pred_check_branch
      %26 = sbr.rel (0) target = $region25
    $region24: #{my_multi_head_attention.1} parent=1 // pred_region
      _
    $region25: #{my_multi_head_attention.1} parent=1 // pred_fallthru
      _
    // Predicated region
    $region26: #{my_multi_head_attention.1} parent=1 // pred_check
      _
    $region27: #{my_multi_head_attention.1} parent=1 // pred_check_branch
      %28 = sbr.rel (0) target = $region29
    $region28: #{my_multi_head_attention.1} parent=1 // pred_region
      _
    $region29: #{my_multi_head_attention.1} parent=1 // pred_fallthru
      _
    // Predicated region
    $region30: #{my_multi_head_attention.1} parent=1 // pred_check
      _
    $region31: #{my_multi_head_attention.1} parent=1 // pred_check_branch
      %30 = sbr.rel (0) target = $region33
    $region32: #{my_multi_head_attention.1} parent=1 // pred_region
      _
    $region33: #{my_multi_head_attention.1} parent=1 // pred_fallthru
      _
    // Predicated region
    $region34: #{my_multi_head_attention.1} parent=1 // pred_check
      _
    $region35: #{my_multi_head_attention.1} parent=1 // pred_check_branch
      %32 = sbr.rel (0) target = $region37
    $region36: #{my_multi_head_attention.1} parent=1 // pred_region
      _
    $region37: #{my_multi_head_attention.1} parent=1 // pred_fallthru
      _
    %v33 = vld [vmem:[%s0] sm:$0xff]
    %v34 = vld [vmem:[%s0 + $0x8] sm:$0xff]
    %v35 = vld [vmem:[%s0 + $0x10] sm:$0xff]
    %v36 = vld [vmem:[%s0 + $0x18] sm:$0xff]
    %v37 = vld [vmem:[%s1] sm:$0xff]
    %v38 = vld [vmem:[%s1 + $0x8] sm:$0xff]
    %v39 = vld [vmem:[%s1 + $0x10] sm:$0xff]
    %v40 = vld [vmem:[%s1 + $0x18] sm:$0xff]
    %v41 = vld [vmem:[%s1 + $0x20] sm:$0xff]
    %v42 = vld [vmem:[%s1 + $0x28] sm:$0xff]
    %v43 = vld [vmem:[%s1 + $0x30] sm:$0xff]
    %v44 = vld [vmem:[%s1 + $0x38] sm:$0xff]
    %v45 = vld [vmem:[%s1 + $0x40] sm:$0xff]
    %v46 = vld [vmem:[%s1 + $0x48] sm:$0xff]
    %v47 = vld [vmem:[%s1 + $0x50] sm:$0xff]
    %v48 = vld [vmem:[%s1 + $0x58] sm:$0xff]
    %v49 = vld [vmem:[%s1 + $0x60] sm:$0xff]
    %v50 = vld [vmem:[%s1 + $0x68] sm:$0xff]
    %v51 = vld [vmem:[%s1 + $0x70] sm:$0xff]
    %v52 = vld [vmem:[%s1 + $0x78] sm:$0xff]
    %v53 = vld [vmem:[%s2] sm:$0x1]
    %v55 = vlaneseq
    %v56 = vshrl.u32 %v55, 7
    %v57 = vsub.s32 0, %v56
    %v58 = vrot.slane %v53, %v57
    %60 = vmatprep.subr.mxu0 0.0
    %61 = vmatpush1.msra.mxu0 %v37
    %62 = vmatprep.subr.mxu0 0.0
    %63 = vmatpush1.msra.mxu0 %v38
    %64 = vmatprep.subr.mxu0 0.0
    %65 = vmatpush1.msra.mxu0 %v39
    %66 = vmatprep.subr.mxu0 0.0
    %67 = vmatpush1.msra.mxu0 %v40
    %68 = vmatprep.subr.mxu0 0.0
    %69 = vmatpush1.msra.mxu0 %v41
    %70 = vmatprep.subr.mxu0 0.0
    %71 = vmatpush1.msra.mxu0 %v42
    %72 = vmatprep.subr.mxu0 0.0
    %73 = vmatpush1.msra.mxu0 %v43
    %74 = vmatprep.subr.mxu0 0.0
    %75 = vmatpush1.msra.mxu0 %v44
    %76 = vmatprep.subr.mxu0 0.0
    %77 = vmatpush1.msra.mxu0 %v45
    %78 = vmatprep.subr.mxu0 0.0
    %79 = vmatpush1.msra.mxu0 %v46
    %80 = vmatprep.subr.mxu0 0.0
    %81 = vmatpush1.msra.mxu0 %v47
    %82 = vmatprep.subr.mxu0 0.0
    %83 = vmatpush1.msra.mxu0 %v48
    %84 = vmatprep.subr.mxu0 0.0
    %85 = vmatpush1.msra.mxu0 %v49
    %86 = vmatprep.subr.mxu0 0.0
    %87 = vmatpush1.msra.mxu0 %v50
    %88 = vmatprep.subr.mxu0 0.0
    %89 = vmatpush1.msra.mxu0 %v51
    %90 = vmatprep.subr.mxu0 0.0
    %91 = vmatpush1.msra.mxu0 %v52
    %92 = vmatprep.subr.mxu0 0.0
    %93 = vmatpush1.msra.mxu0 0.0
    %94 = vmatprep.subr.mxu0 0.0
    %95 = vmatpush1.msra.mxu0 0.0
    %96 = vmatprep.subr.mxu0 0.0
    %97 = vmatpush1.msra.mxu0 0.0
    %98 = vmatprep.subr.mxu0 0.0
    %99 = vmatpush1.msra.mxu0 0.0
    %100 = vmatprep.subr.mxu0 0.0
    %101 = vmatpush1.msra.mxu0 0.0
    %102 = vmatprep.subr.mxu0 0.0
    %103 = vmatpush1.msra.mxu0 0.0
    %104 = vmatprep.subr.mxu0 0.0
    %105 = vmatpush1.msra.mxu0 0.0
    %106 = vmatprep.subr.mxu0 0.0
    %107 = vmatpush1.msra.mxu0 0.0
    %108 = vmatprep.subr.mxu0 0.0
    %109 = vmatpush1.msra.mxu0 0.0
    %110 = vmatprep.subr.mxu0 0.0
    %111 = vmatpush1.msra.mxu0 0.0
    %112 = vmatprep.subr.mxu0 0.0
    %113 = vmatpush1.msra.mxu0 0.0
    %114 = vmatprep.subr.mxu0 0.0
    %115 = vmatpush1.msra.mxu0 0.0
    %116 = vmatprep.subr.mxu0 0.0
    %117 = vmatpush1.msra.mxu0 0.0
    %118 = vmatprep.subr.mxu0 0.0
    %119 = vmatpush1.msra.mxu0 0.0
    %120 = vmatprep.subr.mxu0 0.0
    %121 = vmatpush1.msra.mxu0 0.0
    %122 = vmatprep.subr.mxu0 0.0
    %123 = vmatpush1.msra.mxu0 0.0
    %124 = vmatprep.mubr.f32.mxu0 0.0
    %125 = vmatmul.mubr.f32.gmra.mrb[0].mxu0 %v33
    %v126 = vpop.f32.mrb[0].mxu0
    %v127 = vadd.f32 %v58, %v126
    %v128 = vpop.f32.mrb[0].mxu0
    %129 = vmatprep.mubr.f32.mxu0 0.0
    %130 = vmatmul.mubr.f32.gmra.mrb[0].mxu0 %v34
    %v131 = vpop.f32.mrb[0].mxu0
    %v132 = vadd.f32 %v58, %v131
    %v133 = vpop.f32.mrb[0].mxu0
    %134 = vmatprep.mubr.f32.mxu0 0.0
    %135 = vmatmul.mubr.f32.gmra.mrb[0].mxu0 %v35
    %v136 = vpop.f32.mrb[0].mxu0
    %v137 = vadd.f32 %v58, %v136
    %v138 = vpop.f32.mrb[0].mxu0
    %139 = vmatprep.mubr.f32.mxu0 0.0
    %140 = vmatmul.mubr.f32.gmra.mrb[0].mxu0 %v36
    %v141 = vpop.f32.mrb[0].mxu0
    %v142 = vadd.f32 %v58, %v141
    %v143 = vpop.f32.mrb[0].mxu0
    %144 = vdwg.mxu0
    %v145 = vld [vmem:[%s3] sm:$0xff]
    %v146 = vld [vmem:[%s3 + $0x8] sm:$0xff]
    %v147 = vld [vmem:[%s3 + $0x10] sm:$0xff]
    %v148 = vld [vmem:[%s3 + $0x18] sm:$0xff]
    %v149 = vld [vmem:[%s3 + $0x20] sm:$0xff]
    %v150 = vld [vmem:[%s3 + $0x28] sm:$0xff]
    %v151 = vld [vmem:[%s3 + $0x30] sm:$0xff]
    %v152 = vld [vmem:[%s3 + $0x38] sm:$0xff]
    %v153 = vld [vmem:[%s3 + $0x40] sm:$0xff]
    %v154 = vld [vmem:[%s3 + $0x48] sm:$0xff]
    %v155 = vld [vmem:[%s3 + $0x50] sm:$0xff]
    %v156 = vld [vmem:[%s3 + $0x58] sm:$0xff]
    %v157 = vld [vmem:[%s3 + $0x60] sm:$0xff]
    %v158 = vld [vmem:[%s3 + $0x68] sm:$0xff]
    %v159 = vld [vmem:[%s3 + $0x70] sm:$0xff]
    %v160 = vld [vmem:[%s3 + $0x78] sm:$0xff]
    %v161 = vld [vmem:[%s4] sm:$0x1]
    %v163 = vlaneseq
    %v164 = vshrl.u32 %v163, 7
    %v165 = vsub.s32 0, %v164
    %v166 = vrot.slane %v161, %v165
    %168 = vmatprep.subr.mxu0 0.0
    %169 = vmatpush1.msra.mxu0 %v145
    %170 = vmatprep.subr.mxu0 0.0
    %171 = vmatpush1.msra.mxu0 %v146
    %172 = vmatprep.subr.mxu0 0.0
    %173 = vmatpush1.msra.mxu0 %v147
    %174 = vmatprep.subr.mxu0 0.0
    %175 = vmatpush1.msra.mxu0 %v148
    %176 = vmatprep.subr.mxu0 0.0
    %177 = vmatpush1.msra.mxu0 %v149
    %178 = vmatprep.subr.mxu0 0.0
    %179 = vmatpush1.msra.mxu0 %v150
    %180 = vmatprep.subr.mxu0 0.0
    %181 = vmatpush1.msra.mxu0 %v151
    %182 = vmatprep.subr.mxu0 0.0
    %183 = vmatpush1.msra.mxu0 %v152
    %184 = vmatprep.subr.mxu0 0.0
    %185 = vmatpush1.msra.mxu0 %v153
    %186 = vmatprep.subr.mxu0 0.0
    %187 = vmatpush1.msra.mxu0 %v154
    %188 = vmatprep.subr.mxu0 0.0
    %189 = vmatpush1.msra.mxu0 %v155
    %190 = vmatprep.subr.mxu0 0.0
    %191 = vmatpush1.msra.mxu0 %v156
    %192 = vmatprep.subr.mxu0 0.0
    %193 = vmatpush1.msra.mxu0 %v157
    %194 = vmatprep.subr.mxu0 0.0
    %195 = vmatpush1.msra.mxu0 %v158
    %196 = vmatprep.subr.mxu0 0.0
    %197 = vmatpush1.msra.mxu0 %v159
    %198 = vmatprep.subr.mxu0 0.0
    %199 = vmatpush1.msra.mxu0 %v160
    %200 = vmatprep.subr.mxu0 0.0
    %201 = vmatpush1.msra.mxu0 0.0
    %202 = vmatprep.subr.mxu0 0.0
    %203 = vmatpush1.msra.mxu0 0.0
    %204 = vmatprep.subr.mxu0 0.0
    %205 = vmatpush1.msra.mxu0 0.0
    %206 = vmatprep.subr.mxu0 0.0
    %207 = vmatpush1.msra.mxu0 0.0
    %208 = vmatprep.subr.mxu0 0.0
    %209 = vmatpush1.msra.mxu0 0.0
    %210 = vmatprep.subr.mxu0 0.0
    %211 = vmatpush1.msra.mxu0 0.0
    %212 = vmatprep.subr.mxu0 0.0
    %213 = vmatpush1.msra.mxu0 0.0
    %214 = vmatprep.subr.mxu0 0.0
    %215 = vmatpush1.msra.mxu0 0.0
    %216 = vmatprep.subr.mxu0 0.0
    %217 = vmatpush1.msra.mxu0 0.0
    %218 = vmatprep.subr.mxu0 0.0
    %219 = vmatpush1.msra.mxu0 0.0
    %220 = vmatprep.subr.mxu0 0.0
    %221 = vmatpush1.msra.mxu0 0.0
    %222 = vmatprep.subr.mxu0 0.0
    %223 = vmatpush1.msra.mxu0 0.0
    %224 = vmatprep.subr.mxu0 0.0
    %225 = vmatpush1.msra.mxu0 0.0
    %226 = vmatprep.subr.mxu0 0.0
    %227 = vmatpush1.msra.mxu0 0.0
    %228 = vmatprep.subr.mxu0 0.0
    %229 = vmatpush1.msra.mxu0 0.0
    %230 = vmatprep.subr.mxu0 0.0
    %231 = vmatpush1.msra.mxu0 0.0
    %232 = vmatprep.mubr.f32.mxu0 0.0
    %233 = vmatmul.mubr.f32.gmra.mrb[0].mxu0 %v33
    %v234 = vpop.f32.mrb[0].mxu0
    %v235 = vadd.f32 %v166, %v234
    %v236 = vpop.f32.mrb[0].mxu0
    %237 = vmatprep.mubr.f32.mxu0 0.0
    %238 = vmatmul.mubr.f32.gmra.mrb[0].mxu0 %v34
    %v239 = vpop.f32.mrb[0].mxu0
    %v240 = vadd.f32 %v166, %v239
    %v241 = vpop.f32.mrb[0].mxu0
    %242 = vmatprep.mubr.f32.mxu0 0.0
    %243 = vmatmul.mubr.f32.gmra.mrb[0].mxu0 %v35
    %v244 = vpop.f32.mrb[0].mxu0
    %v245 = vadd.f32 %v166, %v244
    %v246 = vpop.f32.mrb[0].mxu0
    %247 = vmatprep.mubr.f32.mxu0 0.0
    %248 = vmatmul.mubr.f32.gmra.mrb[0].mxu0 %v36
    %v249 = vpop.f32.mrb[0].mxu0
    %v250 = vadd.f32 %v166, %v249
    %v251 = vpop.f32.mrb[0].mxu0
    %252 = vdwg.mxu0
    %v253 = vld [vmem:[%s5] sm:$0xff]
    %v254 = vld [vmem:[%s5 + $0x8] sm:$0xff]
    %v255 = vld [vmem:[%s5 + $0x10] sm:$0xff]
    %v256 = vld [vmem:[%s5 + $0x18] sm:$0xff]
    %v257 = vld [vmem:[%s5 + $0x20] sm:$0xff]
    %v258 = vld [vmem:[%s5 + $0x28] sm:$0xff]
    %v259 = vld [vmem:[%s5 + $0x30] sm:$0xff]
    %v260 = vld [vmem:[%s5 + $0x38] sm:$0xff]
    %v261 = vld [vmem:[%s5 + $0x40] sm:$0xff]
    %v262 = vld [vmem:[%s5 + $0x48] sm:$0xff]
    %v263 = vld [vmem:[%s5 + $0x50] sm:$0xff]
    %v264 = vld [vmem:[%s5 + $0x58] sm:$0xff]
    %v265 = vld [vmem:[%s5 + $0x60] sm:$0xff]
    %v266 = vld [vmem:[%s5 + $0x68] sm:$0xff]
    %v267 = vld [vmem:[%s5 + $0x70] sm:$0xff]
    %v268 = vld [vmem:[%s5 + $0x78] sm:$0xff]
    %v269 = vld [vmem:[%s6] sm:$0x1]
    %v271 = vlaneseq
    %v272 = vshrl.u32 %v271, 7
    %v273 = vsub.s32 0, %v272
    %v274 = vrot.slane %v269, %v273
    %276 = vmatprep.subr.mxu0 0.0
    %277 = vmatpush1.msra.mxu0 %v253
    %278 = vmatprep.subr.mxu0 0.0
    %279 = vmatpush1.msra.mxu0 %v254
    %280 = vmatprep.subr.mxu0 0.0
    %281 = vmatpush1.msra.mxu0 %v255
    %282 = vmatprep.subr.mxu0 0.0
    %283 = vmatpush1.msra.mxu0 %v256
    %284 = vmatprep.subr.mxu0 0.0
    %285 = vmatpush1.msra.mxu0 %v257
    %286 = vmatprep.subr.mxu0 0.0
    %287 = vmatpush1.msra.mxu0 %v258
    %288 = vmatprep.subr.mxu0 0.0
    %289 = vmatpush1.msra.mxu0 %v259
    %290 = vmatprep.subr.mxu0 0.0
    %291 = vmatpush1.msra.mxu0 %v260
    %292 = vmatprep.subr.mxu0 0.0
    %293 = vmatpush1.msra.mxu0 %v261
    %294 = vmatprep.subr.mxu0 0.0
    %295 = vmatpush1.msra.mxu0 %v262
    %296 = vmatprep.subr.mxu0 0.0
    %297 = vmatpush1.msra.mxu0 %v263
    %298 = vmatprep.subr.mxu0 0.0
    %299 = vmatpush1.msra.mxu0 %v264
    %300 = vmatprep.subr.mxu0 0.0
    %301 = vmatpush1.msra.mxu0 %v265
    %302 = vmatprep.subr.mxu0 0.0
    %303 = vmatpush1.msra.mxu0 %v266
    %304 = vmatprep.subr.mxu0 0.0
    %305 = vmatpush1.msra.mxu0 %v267
    %306 = vmatprep.subr.mxu0 0.0
    %307 = vmatpush1.msra.mxu0 %v268
    %308 = vmatprep.subr.mxu0 0.0
    %309 = vmatpush1.msra.mxu0 0.0
    %310 = vmatprep.subr.mxu0 0.0
    %311 = vmatpush1.msra.mxu0 0.0
    %312 = vmatprep.subr.mxu0 0.0
    %313 = vmatpush1.msra.mxu0 0.0
    %314 = vmatprep.subr.mxu0 0.0
    %315 = vmatpush1.msra.mxu0 0.0
    %316 = vmatprep.subr.mxu0 0.0
    %317 = vmatpush1.msra.mxu0 0.0
    %318 = vmatprep.subr.mxu0 0.0
    %319 = vmatpush1.msra.mxu0 0.0
    %320 = vmatprep.subr.mxu0 0.0
    %321 = vmatpush1.msra.mxu0 0.0
    %322 = vmatprep.subr.mxu0 0.0
    %323 = vmatpush1.msra.mxu0 0.0
    %324 = vmatprep.subr.mxu0 0.0
    %325 = vmatpush1.msra.mxu0 0.0
    %326 = vmatprep.subr.mxu0 0.0
    %327 = vmatpush1.msra.mxu0 0.0
    %328 = vmatprep.subr.mxu0 0.0
    %329 = vmatpush1.msra.mxu0 0.0
    %330 = vmatprep.subr.mxu0 0.0
    %331 = vmatpush1.msra.mxu0 0.0
    %332 = vmatprep.subr.mxu0 0.0
    %333 = vmatpush1.msra.mxu0 0.0
    %334 = vmatprep.subr.mxu0 0.0
    %335 = vmatpush1.msra.mxu0 0.0
    %336 = vmatprep.subr.mxu0 0.0
    %337 = vmatpush1.msra.mxu0 0.0
    %338 = vmatprep.subr.mxu0 0.0
    %339 = vmatpush1.msra.mxu0 0.0
    %340 = vmatprep.mubr.f32.mxu0 0.0
    %341 = vmatmul.mubr.f32.gmra.mrb[0].mxu0 %v33
    %v342 = vpop.f32.mrb[0].mxu0
    %v343 = vadd.f32 %v274, %v342
    %v344 = vpop.f32.mrb[0].mxu0
    %345 = vmatprep.mubr.f32.mxu0 0.0
    %346 = vmatmul.mubr.f32.gmra.mrb[0].mxu0 %v34
    %v347 = vpop.f32.mrb[0].mxu0
    %v348 = vadd.f32 %v274, %v347
    %v349 = vpop.f32.mrb[0].mxu0
    %350 = vmatprep.mubr.f32.mxu0 0.0
    %351 = vmatmul.mubr.f32.gmra.mrb[0].mxu0 %v35
    %v352 = vpop.f32.mrb[0].mxu0
    %v353 = vadd.f32 %v274, %v352
    %v354 = vpop.f32.mrb[0].mxu0
    %355 = vmatprep.mubr.f32.mxu0 0.0
    %356 = vmatmul.mubr.f32.gmra.mrb[0].mxu0 %v36
    %v357 = vpop.f32.mrb[0].mxu0
    %v358 = vadd.f32 %v274, %v357
    %v359 = vpop.f32.mrb[0].mxu0
    %360 = vdwg.mxu0
    %vm361 = vcmask 261120
    %v363 = vsel %vm361, %v127, 0
    %v366 = vsel %vm361, %v132, 0
    %v369 = vsel %vm361, %v235, 0
    %v372 = vsel %vm361, %v240, 0
    %374 = vmatprep.subr.mxu0 0.0
    %375 = vmatpush1.xpose.msra.mxu0 %v369
    %376 = vmatprep.subr.mxu0 0.0
    %377 = vmatpush1.xpose.msra.mxu0 %v372
    %378 = vmatprep.subr.mxu0 0.0
    %379 = vmatpush1.xpose.msra.mxu0 0.0
    %380 = vmatprep.subr.mxu0 0.0
    %381 = vmatpush1.xpose.msra.mxu0 0.0
    %382 = vmatprep.subr.mxu0 0.0
    %383 = vmatpush1.xpose.msra.mxu0 0.0
    %384 = vmatprep.subr.mxu0 0.0
    %385 = vmatpush1.xpose.msra.mxu0 0.0
    %386 = vmatprep.subr.mxu0 0.0
    %387 = vmatpush1.xpose.msra.mxu0 0.0
    %388 = vmatprep.subr.mxu0 0.0
    %389 = vmatpush1.xpose.msra.mxu0 0.0
    %390 = vmatprep.subr.mxu0 0.0
    %391 = vmatpush1.xpose.msra.mxu0 0.0
    %392 = vmatprep.subr.mxu0 0.0
    %393 = vmatpush1.xpose.msra.mxu0 0.0
    %394 = vmatprep.subr.mxu0 0.0
    %395 = vmatpush1.xpose.msra.mxu0 0.0
    %396 = vmatprep.subr.mxu0 0.0
    %397 = vmatpush1.xpose.msra.mxu0 0.0
    %398 = vmatprep.subr.mxu0 0.0
    %399 = vmatpush1.xpose.msra.mxu0 0.0
    %400 = vmatprep.subr.mxu0 0.0
    %401 = vmatpush1.xpose.msra.mxu0 0.0
    %402 = vmatprep.subr.mxu0 0.0
    %403 = vmatpush1.xpose.msra.mxu0 0.0
    %404 = vmatprep.subr.mxu0 0.0
    %405 = vmatpush1.xpose.msra.mxu0 0.0
    %406 = vmatprep.subr.mxu0 0.0
    %407 = vmatpush1.xpose.msra.mxu0 0.0
    %408 = vmatprep.subr.mxu0 0.0
    %409 = vmatpush1.xpose.msra.mxu0 0.0
    %410 = vmatprep.subr.mxu0 0.0
    %411 = vmatpush1.xpose.msra.mxu0 0.0
    %412 = vmatprep.subr.mxu0 0.0
    %413 = vmatpush1.xpose.msra.mxu0 0.0
    %414 = vmatprep.subr.mxu0 0.0
    %415 = vmatpush1.xpose.msra.mxu0 0.0
    %416 = vmatprep.subr.mxu0 0.0
    %417 = vmatpush1.xpose.msra.mxu0 0.0
    %418 = vmatprep.subr.mxu0 0.0
    %419 = vmatpush1.xpose.msra.mxu0 0.0
    %420 = vmatprep.subr.mxu0 0.0
    %421 = vmatpush1.xpose.msra.mxu0 0.0
    %422 = vmatprep.subr.mxu0 0.0
    %423 = vmatpush1.xpose.msra.mxu0 0.0
    %424 = vmatprep.subr.mxu0 0.0
    %425 = vmatpush1.xpose.msra.mxu0 0.0
    %426 = vmatprep.subr.mxu0 0.0
    %427 = vmatpush1.xpose.msra.mxu0 0.0
    %428 = vmatprep.subr.mxu0 0.0
    %429 = vmatpush1.xpose.msra.mxu0 0.0
    %430 = vmatprep.subr.mxu0 0.0
    %431 = vmatpush1.xpose.msra.mxu0 0.0
    %432 = vmatprep.subr.mxu0 0.0
    %433 = vmatpush1.xpose.msra.mxu0 0.0
    %434 = vmatprep.subr.mxu0 0.0
    %435 = vmatpush1.xpose.msra.mxu0 0.0
    %436 = vmatprep.subr.mxu0 0.0
    %437 = vmatpush1.xpose.msra.mxu0 0.0
    %438 = vmatprep.mubr.f32.mxu0 0.0
    %439 = vmatmul.mubr.f32.gmra.mrb[0].mxu0 %v363
    %v440 = vpop.f32.mrb[0].mxu0
    %v441 = vadd.f32 0.0, %v440
    %v442 = vpop.f32.mrb[0].mxu0
    %443 = vmatprep.mubr.f32.mxu0 0.0
    %444 = vmatmul.mubr.f32.gmra.mrb[0].mxu0 %v366
    %v445 = vpop.f32.mrb[0].mxu0
    %v446 = vadd.f32 0.0, %v445
    %v447 = vpop.f32.mrb[0].mxu0
    %448 = vdwg.mxu0
    %v449 = vmul.f32 %v441, 0.17677669
    %v450 = vmul.f32 %v446, 0.17677669
    %vm451 = vcmask 130048
    %v452 = vsel %vm451, %v449, -inf
    %453 = vmax.xlane.f32.xlu0 %v452
    %v454 = vpop.xlane.xlu0 %453
    %v455 = vsel %vm451, %v450, -inf
    %456 = vmax.xlane.f32.xlu0 %v455
    %v457 = vpop.xlane.xlu0 %456
    %v458 = vsub.f32 %v449, %v454
    %v459 = vsub.f32 %v450, %v457
    %v460 = vmul.f32 %v458, 1.442695
    %v461 = vpow.pop %v460
    %v462 = vmul.f32 %v459, 1.442695
    %v463 = vpow.pop %v462
    %v464 = vsel %vm451, %v461, 0.0
    %465 = vadd.xlane.f32.xlu0 %v464
    %v466 = vpop.xlane.xlu0 %465
    %v467 = vsel %vm451, %v463, 0.0
    %468 = vadd.xlane.f32.xlu0 %v467
    %v469 = vpop.xlane.xlu0 %468
    %v470 = vrcp.pop %v466
    %v471 = vrcp.pop %v469
    %v472 = vmul.f32 %v461, %v470
    %v473 = vmul.f32 %v463, %v471
    %v475 = vsel %vm451, %v472, 0
    %v478 = vsel %vm451, %v473, 0
    %480 = vmatprep.subr.mxu0 0.0
    %481 = vmatpush1.msra.mxu0 %v343
    %482 = vmatprep.subr.mxu0 0.0
    %483 = vmatpush1.msra.mxu0 %v348
    %484 = vmatprep.subr.mxu0 0.0
    %485 = vmatpush1.msra.mxu0 0.0
    %486 = vmatprep.subr.mxu0 0.0
    %487 = vmatpush1.msra.mxu0 0.0
    %488 = vmatprep.subr.mxu0 0.0
    %489 = vmatpush1.msra.mxu0 0.0
    %490 = vmatprep.subr.mxu0 0.0
    %491 = vmatpush1.msra.mxu0 0.0
    %492 = vmatprep.subr.mxu0 0.0
    %493 = vmatpush1.msra.mxu0 0.0
    %494 = vmatprep.subr.mxu0 0.0
    %495 = vmatpush1.msra.mxu0 0.0
    %496 = vmatprep.subr.mxu0 0.0
    %497 = vmatpush1.msra.mxu0 0.0
    %498 = vmatprep.subr.mxu0 0.0
    %499 = vmatpush1.msra.mxu0 0.0
    %500 = vmatprep.subr.mxu0 0.0
    %501 = vmatpush1.msra.mxu0 0.0
    %502 = vmatprep.subr.mxu0 0.0
    %503 = vmatpush1.msra.mxu0 0.0
    %504 = vmatprep.subr.mxu0 0.0
    %505 = vmatpush1.msra.mxu0 0.0
    %506 = vmatprep.subr.mxu0 0.0
    %507 = vmatpush1.msra.mxu0 0.0
    %508 = vmatprep.subr.mxu0 0.0
    %509 = vmatpush1.msra.mxu0 0.0
    %510 = vmatprep.subr.mxu0 0.0
    %511 = vmatpush1.msra.mxu0 0.0
    %512 = vmatprep.subr.mxu0 0.0
    %513 = vmatpush1.msra.mxu0 0.0
    %514 = vmatprep.subr.mxu0 0.0
    %515 = vmatpush1.msra.mxu0 0.0
    %516 = vmatprep.subr.mxu0 0.0
    %517 = vmatpush1.msra.mxu0 0.0
    %518 = vmatprep.subr.mxu0 0.0
    %519 = vmatpush1.msra.mxu0 0.0
    %520 = vmatprep.subr.mxu0 0.0
    %521 = vmatpush1.msra.mxu0 0.0
    %522 = vmatprep.subr.mxu0 0.0
    %523 = vmatpush1.msra.mxu0 0.0
    %524 = vmatprep.subr.mxu0 0.0
    %525 = vmatpush1.msra.mxu0 0.0
    %526 = vmatprep.subr.mxu0 0.0
    %527 = vmatpush1.msra.mxu0 0.0
    %528 = vmatprep.subr.mxu0 0.0
    %529 = vmatpush1.msra.mxu0 0.0
    %530 = vmatprep.subr.mxu0 0.0
    %531 = vmatpush1.msra.mxu0 0.0
    %532 = vmatprep.subr.mxu0 0.0
    %533 = vmatpush1.msra.mxu0 0.0
    %534 = vmatprep.subr.mxu0 0.0
    %535 = vmatpush1.msra.mxu0 0.0
    %536 = vmatprep.subr.mxu0 0.0
    %537 = vmatpush1.msra.mxu0 0.0
    %538 = vmatprep.subr.mxu0 0.0
    %539 = vmatpush1.msra.mxu0 0.0
    %540 = vmatprep.subr.mxu0 0.0
    %541 = vmatpush1.msra.mxu0 0.0
    %542 = vmatprep.subr.mxu0 0.0
    %543 = vmatpush1.msra.mxu0 0.0
    %544 = vmatprep.mubr.f32.mxu0 0.0
    %545 = vmatmul.mubr.f32.gmra.mrb[0].mxu0 %v475
    %v546 = vpop.f32.mrb[0].mxu0
    %v547 = vadd.f32 0.0, %v546
    %v548 = vpop.f32.mrb[0].mxu0
    %549 = vmatprep.mubr.f32.mxu0 0.0
    %550 = vmatmul.mubr.f32.gmra.mrb[0].mxu0 %v478
    %v551 = vpop.f32.mrb[0].mxu0
    %v552 = vadd.f32 0.0, %v551
    %v553 = vpop.f32.mrb[0].mxu0
    %554 = vdwg.mxu0
    %v555 = vld [vmem:[%s7] sm:$0xff]
    %v556 = vld [vmem:[%s7 + $0x8] sm:$0xff]
    %v557 = vld [vmem:[%s7 + $0x10] sm:$0xff]
    %v558 = vld [vmem:[%s7 + $0x18] sm:$0xff]
    %559 = vrot.lane.b32.xlu0 %v127, 96
    %v560 = vpop.permute.xlu0 %559
    %561 = vrot.lane.b32.xlu0 %v132, 96
    %v562 = vpop.permute.xlu0 %561
    %563 = vrot.lane.b32.xlu0 %v235, 96
    %v564 = vpop.permute.xlu0 %563
    %565 = vrot.lane.b32.xlu0 %v240, 96
    %v566 = vpop.permute.xlu0 %565
    %v567 = vsel %vm361, %v560, 0
    %v569 = vsel %vm361, %v562, 0
    %v571 = vsel %vm361, %v564, 0
    %v573 = vsel %vm361, %v566, 0
    %575 = vmatprep.subr.mxu0 0.0
    %576 = vmatpush1.xpose.msra.mxu0 %v571
    %577 = vmatprep.subr.mxu0 0.0
    %578 = vmatpush1.xpose.msra.mxu0 %v573
    %579 = vmatprep.subr.mxu0 0.0
    %580 = vmatpush1.xpose.msra.mxu0 0.0
    %581 = vmatprep.subr.mxu0 0.0
    %582 = vmatpush1.xpose.msra.mxu0 0.0
    %583 = vmatprep.subr.mxu0 0.0
    %584 = vmatpush1.xpose.msra.mxu0 0.0
    %585 = vmatprep.subr.mxu0 0.0
    %586 = vmatpush1.xpose.msra.mxu0 0.0
    %587 = vmatprep.subr.mxu0 0.0
    %588 = vmatpush1.xpose.msra.mxu0 0.0
    %589 = vmatprep.subr.mxu0 0.0
    %590 = vmatpush1.xpose.msra.mxu0 0.0
    %591 = vmatprep.subr.mxu0 0.0
    %592 = vmatpush1.xpose.msra.mxu0 0.0
    %593 = vmatprep.subr.mxu0 0.0
    %594 = vmatpush1.xpose.msra.mxu0 0.0
    %595 = vmatprep.subr.mxu0 0.0
    %596 = vmatpush1.xpose.msra.mxu0 0.0
    %597 = vmatprep.subr.mxu0 0.0
    %598 = vmatpush1.xpose.msra.mxu0 0.0
    %599 = vmatprep.subr.mxu0 0.0
    %600 = vmatpush1.xpose.msra.mxu0 0.0
    %601 = vmatprep.subr.mxu0 0.0
    %602 = vmatpush1.xpose.msra.mxu0 0.0
    %603 = vmatprep.subr.mxu0 0.0
    %604 = vmatpush1.xpose.msra.mxu0 0.0
    %605 = vmatprep.subr.mxu0 0.0
    %606 = vmatpush1.xpose.msra.mxu0 0.0
    %607 = vmatprep.subr.mxu0 0.0
    %608 = vmatpush1.xpose.msra.mxu0 0.0
    %609 = vmatprep.subr.mxu0 0.0
    %610 = vmatpush1.xpose.msra.mxu0 0.0
    %611 = vmatprep.subr.mxu0 0.0
    %612 = vmatpush1.xpose.msra.mxu0 0.0
    %613 = vmatprep.subr.mxu0 0.0
    %614 = vmatpush1.xpose.msra.mxu0 0.0
    %615 = vmatprep.subr.mxu0 0.0
    %616 = vmatpush1.xpose.msra.mxu0 0.0
    %617 = vmatprep.subr.mxu0 0.0
    %618 = vmatpush1.xpose.msra.mxu0 0.0
    %619 = vmatprep.subr.mxu0 0.0
    %620 = vmatpush1.xpose.msra.mxu0 0.0
    %621 = vmatprep.subr.mxu0 0.0
    %622 = vmatpush1.xpose.msra.mxu0 0.0
    %623 = vmatprep.subr.mxu0 0.0
    %624 = vmatpush1.xpose.msra.mxu0 0.0
    %625 = vmatprep.subr.mxu0 0.0
    %626 = vmatpush1.xpose.msra.mxu0 0.0
    %627 = vmatprep.subr.mxu0 0.0
    %628 = vmatpush1.xpose.msra.mxu0 0.0
    %629 = vmatprep.subr.mxu0 0.0
    %630 = vmatpush1.xpose.msra.mxu0 0.0
    %631 = vmatprep.subr.mxu0 0.0
    %632 = vmatpush1.xpose.msra.mxu0 0.0
    %633 = vmatprep.subr.mxu0 0.0
    %634 = vmatpush1.xpose.msra.mxu0 0.0
    %635 = vmatprep.subr.mxu0 0.0
    %636 = vmatpush1.xpose.msra.mxu0 0.0
    %637 = vmatprep.subr.mxu0 0.0
    %638 = vmatpush1.xpose.msra.mxu0 0.0
    %639 = vmatprep.mubr.f32.mxu0 0.0
    %640 = vmatmul.mubr.f32.gmra.mrb[0].mxu0 %v567
    %v641 = vpop.f32.mrb[0].mxu0
    %v642 = vadd.f32 0.0, %v641
    %v643 = vpop.f32.mrb[0].mxu0
    %644 = vmatprep.mubr.f32.mxu0 0.0
    %645 = vmatmul.mubr.f32.gmra.mrb[0].mxu0 %v569
    %v646 = vpop.f32.mrb[0].mxu0
    %v647 = vadd.f32 0.0, %v646
    %v648 = vpop.f32.mrb[0].mxu0
    %649 = vdwg.mxu0
    %v650 = vmul.f32 %v642, 0.17677669
    %v651 = vmul.f32 %v647, 0.17677669
    %v652 = vsel %vm451, %v650, -inf
    %653 = vmax.xlane.f32.xlu0 %v652
    %v654 = vpop.xlane.xlu0 %653
    %v655 = vsel %vm451, %v651, -inf
    %656 = vmax.xlane.f32.xlu0 %v655
    %v657 = vpop.xlane.xlu0 %656
    %v658 = vsub.f32 %v650, %v654
    %v659 = vsub.f32 %v651, %v657
    %v660 = vmul.f32 %v658, 1.442695
    %v661 = vpow.pop %v660
    %v662 = vmul.f32 %v659, 1.442695
    %v663 = vpow.pop %v662
    %v664 = vsel %vm451, %v661, 0.0
    %665 = vadd.xlane.f32.xlu0 %v664
    %v666 = vpop.xlane.xlu0 %665
    %v667 = vsel %vm451, %v663, 0.0
    %668 = vadd.xlane.f32.xlu0 %v667
    %v669 = vpop.xlane.xlu0 %668
    %v670 = vrcp.pop %v666
    %v671 = vrcp.pop %v669
    %v672 = vmul.f32 %v661, %v670
    %v673 = vmul.f32 %v663, %v671
    %676 = vrot.lane.b32.xlu0 %v343, 96
    %v677 = vpop.permute.xlu0 %676
    %678 = vrot.lane.b32.xlu0 %v348, 96
    %v679 = vpop.permute.xlu0 %678
    %v683 = vsel %vm451, %v672, 0
    %v686 = vsel %vm451, %v673, 0
    %688 = vmatprep.subr.mxu0 0.0
    %689 = vmatpush1.msra.mxu0 %v677
    %690 = vmatprep.subr.mxu0 0.0
    %691 = vmatpush1.msra.mxu0 %v679
    %692 = vmatprep.subr.mxu0 0.0
    %693 = vmatpush1.msra.mxu0 0.0
    %694 = vmatprep.subr.mxu0 0.0
    %695 = vmatpush1.msra.mxu0 0.0
    %696 = vmatprep.subr.mxu0 0.0
    %697 = vmatpush1.msra.mxu0 0.0
    %698 = vmatprep.subr.mxu0 0.0
    %699 = vmatpush1.msra.mxu0 0.0
    %700 = vmatprep.subr.mxu0 0.0
    %701 = vmatpush1.msra.mxu0 0.0
    %702 = vmatprep.subr.mxu0 0.0
    %703 = vmatpush1.msra.mxu0 0.0
    %704 = vmatprep.subr.mxu0 0.0
    %705 = vmatpush1.msra.mxu0 0.0
    %706 = vmatprep.subr.mxu0 0.0
    %707 = vmatpush1.msra.mxu0 0.0
    %708 = vmatprep.subr.mxu0 0.0
    %709 = vmatpush1.msra.mxu0 0.0
    %710 = vmatprep.subr.mxu0 0.0
    %711 = vmatpush1.msra.mxu0 0.0
    %712 = vmatprep.subr.mxu0 0.0
    %713 = vmatpush1.msra.mxu0 0.0
    %714 = vmatprep.subr.mxu0 0.0
    %715 = vmatpush1.msra.mxu0 0.0
    %716 = vmatprep.subr.mxu0 0.0
    %717 = vmatpush1.msra.mxu0 0.0
    %718 = vmatprep.subr.mxu0 0.0
    %719 = vmatpush1.msra.mxu0 0.0
    %720 = vmatprep.subr.mxu0 0.0
    %721 = vmatpush1.msra.mxu0 0.0
    %722 = vmatprep.subr.mxu0 0.0
    %723 = vmatpush1.msra.mxu0 0.0
    %724 = vmatprep.subr.mxu0 0.0
    %725 = vmatpush1.msra.mxu0 0.0
    %726 = vmatprep.subr.mxu0 0.0
    %727 = vmatpush1.msra.mxu0 0.0
    %728 = vmatprep.subr.mxu0 0.0
    %729 = vmatpush1.msra.mxu0 0.0
    %730 = vmatprep.subr.mxu0 0.0
    %731 = vmatpush1.msra.mxu0 0.0
    %732 = vmatprep.subr.mxu0 0.0
    %733 = vmatpush1.msra.mxu0 0.0
    %734 = vmatprep.subr.mxu0 0.0
    %735 = vmatpush1.msra.mxu0 0.0
    %736 = vmatprep.subr.mxu0 0.0
    %737 = vmatpush1.msra.mxu0 0.0
    %738 = vmatprep.subr.mxu0 0.0
    %739 = vmatpush1.msra.mxu0 0.0
    %740 = vmatprep.subr.mxu0 0.0
    %741 = vmatpush1.msra.mxu0 0.0
    %742 = vmatprep.subr.mxu0 0.0
    %743 = vmatpush1.msra.mxu0 0.0
    %744 = vmatprep.subr.mxu0 0.0
    %745 = vmatpush1.msra.mxu0 0.0
    %746 = vmatprep.subr.mxu0 0.0
    %747 = vmatpush1.msra.mxu0 0.0
    %748 = vmatprep.subr.mxu0 0.0
    %749 = vmatpush1.msra.mxu0 0.0
    %750 = vmatprep.subr.mxu0 0.0
    %751 = vmatpush1.msra.mxu0 0.0
    %752 = vmatprep.mubr.f32.mxu0 0.0
    %753 = vmatmul.mubr.f32.gmra.mrb[0].mxu0 %v683
    %v754 = vpop.f32.mrb[0].mxu0
    %v755 = vadd.f32 0.0, %v754
    %v756 = vpop.f32.mrb[0].mxu0
    %757 = vmatprep.mubr.f32.mxu0 0.0
    %758 = vmatmul.mubr.f32.gmra.mrb[0].mxu0 %v686
    %v759 = vpop.f32.mrb[0].mxu0
    %v760 = vadd.f32 0.0, %v759
    %v761 = vpop.f32.mrb[0].mxu0
    %762 = vdwg.mxu0
    %v763 = vld [vmem:[%s7 + $0x20] sm:$0xff]
    %v764 = vld [vmem:[%s7 + $0x28] sm:$0xff]
    %v765 = vld [vmem:[%s7 + $0x30] sm:$0xff]
    %v766 = vld [vmem:[%s7 + $0x38] sm:$0xff]
    %v768 = vsel %vm361, %v755, 0
    %v771 = vsel %vm361, %v760, 0
    %773 = vmatprep.subr.mxu0 0.0
    %774 = vmatpush1.msra.mxu0 %v763
    %775 = vmatprep.subr.mxu0 0.0
    %776 = vmatpush1.msra.mxu0 %v764
    %777 = vmatprep.subr.mxu0 0.0
    %778 = vmatpush1.msra.mxu0 %v765
    %779 = vmatprep.subr.mxu0 0.0
    %780 = vmatpush1.msra.mxu0 %v766
    %781 = vmatprep.subr.mxu0 0.0
    %782 = vmatpush1.msra.mxu0 0.0
    %783 = vmatprep.subr.mxu0 0.0
    %784 = vmatpush1.msra.mxu0 0.0
    %785 = vmatprep.subr.mxu0 0.0
    %786 = vmatpush1.msra.mxu0 0.0
    %787 = vmatprep.subr.mxu0 0.0
    %788 = vmatpush1.msra.mxu0 0.0
    %789 = vmatprep.subr.mxu0 0.0
    %790 = vmatpush1.msra.mxu0 0.0
    %791 = vmatprep.subr.mxu0 0.0
    %792 = vmatpush1.msra.mxu0 0.0
    %793 = vmatprep.subr.mxu0 0.0
    %794 = vmatpush1.msra.mxu0 0.0
    %795 = vmatprep.subr.mxu0 0.0
    %796 = vmatpush1.msra.mxu0 0.0
    %797 = vmatprep.subr.mxu0 0.0
    %798 = vmatpush1.msra.mxu0 0.0
    %799 = vmatprep.subr.mxu0 0.0
    %800 = vmatpush1.msra.mxu0 0.0
    %801 = vmatprep.subr.mxu0 0.0
    %802 = vmatpush1.msra.mxu0 0.0
    %803 = vmatprep.subr.mxu0 0.0
    %804 = vmatpush1.msra.mxu0 0.0
    %805 = vmatprep.subr.mxu0 0.0
    %806 = vmatpush1.msra.mxu0 0.0
    %807 = vmatprep.subr.mxu0 0.0
    %808 = vmatpush1.msra.mxu0 0.0
    %809 = vmatprep.subr.mxu0 0.0
    %810 = vmatpush1.msra.mxu0 0.0
    %811 = vmatprep.subr.mxu0 0.0
    %812 = vmatpush1.msra.mxu0 0.0
    %813 = vmatprep.subr.mxu0 0.0
    %814 = vmatpush1.msra.mxu0 0.0
    %815 = vmatprep.subr.mxu0 0.0
    %816 = vmatpush1.msra.mxu0 0.0
    %817 = vmatprep.subr.mxu0 0.0
    %818 = vmatpush1.msra.mxu0 0.0
    %819 = vmatprep.subr.mxu0 0.0
    %820 = vmatpush1.msra.mxu0 0.0
    %821 = vmatprep.subr.mxu0 0.0
    %822 = vmatpush1.msra.mxu0 0.0
    %823 = vmatprep.subr.mxu0 0.0
    %824 = vmatpush1.msra.mxu0 0.0
    %825 = vmatprep.subr.mxu0 0.0
    %826 = vmatpush1.msra.mxu0 0.0
    %827 = vmatprep.subr.mxu0 0.0
    %828 = vmatpush1.msra.mxu0 0.0
    %829 = vmatprep.subr.mxu0 0.0
    %830 = vmatpush1.msra.mxu0 0.0
    %831 = vmatprep.subr.mxu0 0.0
    %832 = vmatpush1.msra.mxu0 0.0
    %833 = vmatprep.subr.mxu0 0.0
    %834 = vmatpush1.msra.mxu0 0.0
    %835 = vmatprep.subr.mxu0 0.0
    %836 = vmatpush1.msra.mxu0 0.0
    %837 = vmatprep.mubr.f32.mxu0 0.0
    %838 = vmatmul.mubr.f32.gmra.mrb[0].mxu0 %v768
    %v839 = vpop.f32.mrb[0].mxu0
    %v840 = vadd.f32 0.0, %v839
    %v841 = vpop.f32.mrb[0].mxu0
    %842 = vmatprep.mubr.f32.mxu0 0.0
    %843 = vmatmul.mubr.f32.gmra.mrb[0].mxu0 %v771
    %v844 = vpop.f32.mrb[0].mxu0
    %v845 = vadd.f32 0.0, %v844
    %v846 = vpop.f32.mrb[0].mxu0
    %847 = vdwg.mxu0
    %v849 = vsel %vm361, %v547, 0
    %v852 = vsel %vm361, %v552, 0
    %854 = vmatprep.subr.mxu0 0.0
    %855 = vmatpush1.msra.mxu0 %v555
    %856 = vmatprep.subr.mxu0 0.0
    %857 = vmatpush1.msra.mxu0 %v556
    %858 = vmatprep.subr.mxu0 0.0
    %859 = vmatpush1.msra.mxu0 %v557
    %860 = vmatprep.subr.mxu0 0.0
    %861 = vmatpush1.msra.mxu0 %v558
    %862 = vmatprep.subr.mxu0 0.0
    %863 = vmatpush1.msra.mxu0 0.0
    %864 = vmatprep.subr.mxu0 0.0
    %865 = vmatpush1.msra.mxu0 0.0
    %866 = vmatprep.subr.mxu0 0.0
    %867 = vmatpush1.msra.mxu0 0.0
    %868 = vmatprep.subr.mxu0 0.0
    %869 = vmatpush1.msra.mxu0 0.0
    %870 = vmatprep.subr.mxu0 0.0
    %871 = vmatpush1.msra.mxu0 0.0
    %872 = vmatprep.subr.mxu0 0.0
    %873 = vmatpush1.msra.mxu0 0.0
    %874 = vmatprep.subr.mxu0 0.0
    %875 = vmatpush1.msra.mxu0 0.0
    %876 = vmatprep.subr.mxu0 0.0
    %877 = vmatpush1.msra.mxu0 0.0
    %878 = vmatprep.subr.mxu0 0.0
    %879 = vmatpush1.msra.mxu0 0.0
    %880 = vmatprep.subr.mxu0 0.0
    %881 = vmatpush1.msra.mxu0 0.0
    %882 = vmatprep.subr.mxu0 0.0
    %883 = vmatpush1.msra.mxu0 0.0
    %884 = vmatprep.subr.mxu0 0.0
    %885 = vmatpush1.msra.mxu0 0.0
    %886 = vmatprep.subr.mxu0 0.0
    %887 = vmatpush1.msra.mxu0 0.0
    %888 = vmatprep.subr.mxu0 0.0
    %889 = vmatpush1.msra.mxu0 0.0
    %890 = vmatprep.subr.mxu0 0.0
    %891 = vmatpush1.msra.mxu0 0.0
    %892 = vmatprep.subr.mxu0 0.0
    %893 = vmatpush1.msra.mxu0 0.0
    %894 = vmatprep.subr.mxu0 0.0
    %895 = vmatpush1.msra.mxu0 0.0
    %896 = vmatprep.subr.mxu0 0.0
    %897 = vmatpush1.msra.mxu0 0.0
    %898 = vmatprep.subr.mxu0 0.0
    %899 = vmatpush1.msra.mxu0 0.0
    %900 = vmatprep.subr.mxu0 0.0
    %901 = vmatpush1.msra.mxu0 0.0
    %902 = vmatprep.subr.mxu0 0.0
    %903 = vmatpush1.msra.mxu0 0.0
    %904 = vmatprep.subr.mxu0 0.0
    %905 = vmatpush1.msra.mxu0 0.0
    %906 = vmatprep.subr.mxu0 0.0
    %907 = vmatpush1.msra.mxu0 0.0
    %908 = vmatprep.subr.mxu0 0.0
    %909 = vmatpush1.msra.mxu0 0.0
    %910 = vmatprep.subr.mxu0 0.0
    %911 = vmatpush1.msra.mxu0 0.0
    %912 = vmatprep.subr.mxu0 0.0
    %913 = vmatpush1.msra.mxu0 0.0
    %914 = vmatprep.subr.mxu0 0.0
    %915 = vmatpush1.msra.mxu0 0.0
    %916 = vmatprep.subr.mxu0 0.0
    %917 = vmatpush1.msra.mxu0 0.0
    %918 = vmatprep.mubr.f32.mxu0 0.0
    %919 = vmatmul.mubr.f32.gmra.mrb[0].mxu0 %v849
    %v920 = vpop.f32.mrb[0].mxu0
    %v921 = vadd.f32 %v840, %v920
    %v922 = vpop.f32.mrb[0].mxu0
    %923 = vmatprep.mubr.f32.mxu0 0.0
    %924 = vmatmul.mubr.f32.gmra.mrb[0].mxu0 %v852
    %v925 = vpop.f32.mrb[0].mxu0
    %v926 = vadd.f32 %v845, %v925
    %v927 = vpop.f32.mrb[0].mxu0
    %928 = vdwg.mxu0
    %929 = vrot.lane.b32.xlu0 %v127, 64
    %v930 = vpop.permute.xlu0 %929
    %931 = vrot.lane.b32.xlu0 %v132, 64
    %v932 = vpop.permute.xlu0 %931
    %933 = vrot.lane.b32.xlu0 %v235, 64
    %v934 = vpop.permute.xlu0 %933
    %935 = vrot.lane.b32.xlu0 %v240, 64
    %v936 = vpop.permute.xlu0 %935
    %v937 = vsel %vm361, %v930, 0
    %v939 = vsel %vm361, %v932, 0
    %v941 = vsel %vm361, %v934, 0
    %v943 = vsel %vm361, %v936, 0
    %945 = vmatprep.subr.mxu0 0.0
    %946 = vmatpush1.xpose.msra.mxu0 %v941
    %947 = vmatprep.subr.mxu0 0.0
    %948 = vmatpush1.xpose.msra.mxu0 %v943
    %949 = vmatprep.subr.mxu0 0.0
    %950 = vmatpush1.xpose.msra.mxu0 0.0
    %951 = vmatprep.subr.mxu0 0.0
    %952 = vmatpush1.xpose.msra.mxu0 0.0
    %953 = vmatprep.subr.mxu0 0.0
    %954 = vmatpush1.xpose.msra.mxu0 0.0
    %955 = vmatprep.subr.mxu0 0.0
    %956 = vmatpush1.xpose.msra.mxu0 0.0
    %957 = vmatprep.subr.mxu0 0.0
    %958 = vmatpush1.xpose.msra.mxu0 0.0
    %959 = vmatprep.subr.mxu0 0.0
    %960 = vmatpush1.xpose.msra.mxu0 0.0
    %961 = vmatprep.subr.mxu0 0.0
    %962 = vmatpush1.xpose.msra.mxu0 0.0
    %963 = vmatprep.subr.mxu0 0.0
    %964 = vmatpush1.xpose.msra.mxu0 0.0
    %965 = vmatprep.subr.mxu0 0.0
    %966 = vmatpush1.xpose.msra.mxu0 0.0
    %967 = vmatprep.subr.mxu0 0.0
    %968 = vmatpush1.xpose.msra.mxu0 0.0
    %969 = vmatprep.subr.mxu0 0.0
    %970 = vmatpush1.xpose.msra.mxu0 0.0
    %971 = vmatprep.subr.mxu0 0.0
    %972 = vmatpush1.xpose.msra.mxu0 0.0
    %973 = vmatprep.subr.mxu0 0.0
    %974 = vmatpush1.xpose.msra.mxu0 0.0
    %975 = vmatprep.subr.mxu0 0.0
    %976 = vmatpush1.xpose.msra.mxu0 0.0
    %977 = vmatprep.subr.mxu0 0.0
    %978 = vmatpush1.xpose.msra.mxu0 0.0
    %979 = vmatprep.subr.mxu0 0.0
    %980 = vmatpush1.xpose.msra.mxu0 0.0
    %981 = vmatprep.subr.mxu0 0.0
    %982 = vmatpush1.xpose.msra.mxu0 0.0
    %983 = vmatprep.subr.mxu0 0.0
    %984 = vmatpush1.xpose.msra.mxu0 0.0
    %985 = vmatprep.subr.mxu0 0.0
    %986 = vmatpush1.xpose.msra.mxu0 0.0
    %987 = vmatprep.subr.mxu0 0.0
    %988 = vmatpush1.xpose.msra.mxu0 0.0
    %989 = vmatprep.subr.mxu0 0.0
    %990 = vmatpush1.xpose.msra.mxu0 0.0
    %991 = vmatprep.subr.mxu0 0.0
    %992 = vmatpush1.xpose.msra.mxu0 0.0
    %993 = vmatprep.subr.mxu0 0.0
    %994 = vmatpush1.xpose.msra.mxu0 0.0
    %995 = vmatprep.subr.mxu0 0.0
    %996 = vmatpush1.xpose.msra.mxu0 0.0
    %997 = vmatprep.subr.mxu0 0.0
    %998 = vmatpush1.xpose.msra.mxu0 0.0
    %999 = vmatprep.subr.mxu0 0.0
    %1000 = vmatpush1.xpose.msra.mxu0 0.0
    %1001 = vmatprep.subr.mxu0 0.0
    %1002 = vmatpush1.xpose.msra.mxu0 0.0
    %1003 = vmatprep.subr.mxu0 0.0
    %1004 = vmatpush1.xpose.msra.mxu0 0.0
    %1005 = vmatprep.subr.mxu0 0.0
    %1006 = vmatpush1.xpose.msra.mxu0 0.0
    %1007 = vmatprep.subr.mxu0 0.0
    %1008 = vmatpush1.xpose.msra.mxu0 0.0
    %1009 = vmatprep.mubr.f32.mxu0 0.0
    %1010 = vmatmul.mubr.f32.gmra.mrb[0].mxu0 %v937
    %v1011 = vpop.f32.mrb[0].mxu0
    %v1012 = vadd.f32 0.0, %v1011
    %v1013 = vpop.f32.mrb[0].mxu0
    %1014 = vmatprep.mubr.f32.mxu0 0.0
    %1015 = vmatmul.mubr.f32.gmra.mrb[0].mxu0 %v939
    %v1016 = vpop.f32.mrb[0].mxu0
    %v1017 = vadd.f32 0.0, %v1016
    %v1018 = vpop.f32.mrb[0].mxu0
    %1019 = vdwg.mxu0
    %v1020 = vmul.f32 %v1012, 0.17677669
    %v1021 = vmul.f32 %v1017, 0.17677669
    %v1022 = vsel %vm451, %v1020, -inf
    %1023 = vmax.xlane.f32.xlu0 %v1022
    %v1024 = vpop.xlane.xlu0 %1023
    %v1025 = vsel %vm451, %v1021, -inf
    %1026 = vmax.xlane.f32.xlu0 %v1025
    %v1027 = vpop.xlane.xlu0 %1026
    %v1028 = vsub.f32 %v1020, %v1024
    %v1029 = vsub.f32 %v1021, %v1027
    %v1030 = vmul.f32 %v1028, 1.442695
    %v1031 = vpow.pop %v1030
    %v1032 = vmul.f32 %v1029, 1.442695
    %v1033 = vpow.pop %v1032
    %v1034 = vsel %vm451, %v1031, 0.0
    %1035 = vadd.xlane.f32.xlu0 %v1034
    %v1036 = vpop.xlane.xlu0 %1035
    %v1037 = vsel %vm451, %v1033, 0.0
    %1038 = vadd.xlane.f32.xlu0 %v1037
    %v1039 = vpop.xlane.xlu0 %1038
    %v1040 = vrcp.pop %v1036
    %v1041 = vrcp.pop %v1039
    %v1042 = vmul.f32 %v1031, %v1040
    %v1043 = vmul.f32 %v1033, %v1041
    %1044 = vrot.lane.b32.xlu0 %v343, 64
    %v1045 = vpop.permute.xlu0 %1044
    %1046 = vrot.lane.b32.xlu0 %v348, 64
    %v1047 = vpop.permute.xlu0 %1046
    %v1051 = vsel %vm451, %v1042, 0
    %v1054 = vsel %vm451, %v1043, 0
    %1056 = vmatprep.subr.mxu0 0.0
    %1057 = vmatpush1.msra.mxu0 %v1045
    %1058 = vmatprep.subr.mxu0 0.0
    %1059 = vmatpush1.msra.mxu0 %v1047
    %1060 = vmatprep.subr.mxu0 0.0
    %1061 = vmatpush1.msra.mxu0 0.0
    %1062 = vmatprep.subr.mxu0 0.0
    %1063 = vmatpush1.msra.mxu0 0.0
    %1064 = vmatprep.subr.mxu0 0.0
    %1065 = vmatpush1.msra.mxu0 0.0
    %1066 = vmatprep.subr.mxu0 0.0
    %1067 = vmatpush1.msra.mxu0 0.0
    %1068 = vmatprep.subr.mxu0 0.0
    %1069 = vmatpush1.msra.mxu0 0.0
    %1070 = vmatprep.subr.mxu0 0.0
    %1071 = vmatpush1.msra.mxu0 0.0
    %1072 = vmatprep.subr.mxu0 0.0
    %1073 = vmatpush1.msra.mxu0 0.0
    %1074 = vmatprep.subr.mxu0 0.0
    %1075 = vmatpush1.msra.mxu0 0.0
    %1076 = vmatprep.subr.mxu0 0.0
    %1077 = vmatpush1.msra.mxu0 0.0
    %1078 = vmatprep.subr.mxu0 0.0
    %1079 = vmatpush1.msra.mxu0 0.0
    %1080 = vmatprep.subr.mxu0 0.0
    %1081 = vmatpush1.msra.mxu0 0.0
    %1082 = vmatprep.subr.mxu0 0.0
    %1083 = vmatpush1.msra.mxu0 0.0
    %1084 = vmatprep.subr.mxu0 0.0
    %1085 = vmatpush1.msra.mxu0 0.0
    %1086 = vmatprep.subr.mxu0 0.0
    %1087 = vmatpush1.msra.mxu0 0.0
    %1088 = vmatprep.subr.mxu0 0.0
    %1089 = vmatpush1.msra.mxu0 0.0
    %1090 = vmatprep.subr.mxu0 0.0
    %1091 = vmatpush1.msra.mxu0 0.0
    %1092 = vmatprep.subr.mxu0 0.0
    %1093 = vmatpush1.msra.mxu0 0.0
    %1094 = vmatprep.subr.mxu0 0.0
    %1095 = vmatpush1.msra.mxu0 0.0
    %1096 = vmatprep.subr.mxu0 0.0
    %1097 = vmatpush1.msra.mxu0 0.0
    %1098 = vmatprep.subr.mxu0 0.0
    %1099 = vmatpush1.msra.mxu0 0.0
    %1100 = vmatprep.subr.mxu0 0.0
    %1101 = vmatpush1.msra.mxu0 0.0
    %1102 = vmatprep.subr.mxu0 0.0
    %1103 = vmatpush1.msra.mxu0 0.0
    %1104 = vmatprep.subr.mxu0 0.0
    %1105 = vmatpush1.msra.mxu0 0.0
    %1106 = vmatprep.subr.mxu0 0.0
    %1107 = vmatpush1.msra.mxu0 0.0
    %1108 = vmatprep.subr.mxu0 0.0
    %1109 = vmatpush1.msra.mxu0 0.0
    %1110 = vmatprep.subr.mxu0 0.0
    %1111 = vmatpush1.msra.mxu0 0.0
    %1112 = vmatprep.subr.mxu0 0.0
    %1113 = vmatpush1.msra.mxu0 0.0
    %1114 = vmatprep.subr.mxu0 0.0
    %1115 = vmatpush1.msra.mxu0 0.0
    %1116 = vmatprep.subr.mxu0 0.0
    %1117 = vmatpush1.msra.mxu0 0.0
    %1118 = vmatprep.subr.mxu0 0.0
    %1119 = vmatpush1.msra.mxu0 0.0
    %1120 = vmatprep.mubr.f32.mxu0 0.0
    %1121 = vmatmul.mubr.f32.gmra.mrb[0].mxu0 %v1051
    %v1122 = vpop.f32.mrb[0].mxu0
    %v1123 = vadd.f32 0.0, %v1122
    %v1124 = vpop.f32.mrb[0].mxu0
    %1125 = vmatprep.mubr.f32.mxu0 0.0
    %1126 = vmatmul.mubr.f32.gmra.mrb[0].mxu0 %v1054
    %v1127 = vpop.f32.mrb[0].mxu0
    %v1128 = vadd.f32 0.0, %v1127
    %v1129 = vpop.f32.mrb[0].mxu0
    %1130 = vdwg.mxu0
    %v1131 = vld [vmem:[%s7 + $0x40] sm:$0xff]
    %v1132 = vld [vmem:[%s7 + $0x48] sm:$0xff]
    %v1133 = vld [vmem:[%s7 + $0x50] sm:$0xff]
    %v1134 = vld [vmem:[%s7 + $0x58] sm:$0xff]
    %v1136 = vsel %vm361, %v1123, 0
    %v1139 = vsel %vm361, %v1128, 0
    %1141 = vmatprep.subr.mxu0 0.0
    %1142 = vmatpush1.msra.mxu0 %v1131
    %1143 = vmatprep.subr.mxu0 0.0
    %1144 = vmatpush1.msra.mxu0 %v1132
    %1145 = vmatprep.subr.mxu0 0.0
    %1146 = vmatpush1.msra.mxu0 %v1133
    %1147 = vmatprep.subr.mxu0 0.0
    %1148 = vmatpush1.msra.mxu0 %v1134
    %1149 = vmatprep.subr.mxu0 0.0
    %1150 = vmatpush1.msra.mxu0 0.0
    %1151 = vmatprep.subr.mxu0 0.0
    %1152 = vmatpush1.msra.mxu0 0.0
    %1153 = vmatprep.subr.mxu0 0.0
    %1154 = vmatpush1.msra.mxu0 0.0
    %1155 = vmatprep.subr.mxu0 0.0
    %1156 = vmatpush1.msra.mxu0 0.0
    %1157 = vmatprep.subr.mxu0 0.0
    %1158 = vmatpush1.msra.mxu0 0.0
    %1159 = vmatprep.subr.mxu0 0.0
    %1160 = vmatpush1.msra.mxu0 0.0
    %1161 = vmatprep.subr.mxu0 0.0
    %1162 = vmatpush1.msra.mxu0 0.0
    %1163 = vmatprep.subr.mxu0 0.0
    %1164 = vmatpush1.msra.mxu0 0.0
    %1165 = vmatprep.subr.mxu0 0.0
    %1166 = vmatpush1.msra.mxu0 0.0
    %1167 = vmatprep.subr.mxu0 0.0
    %1168 = vmatpush1.msra.mxu0 0.0
    %1169 = vmatprep.subr.mxu0 0.0
    %1170 = vmatpush1.msra.mxu0 0.0
    %1171 = vmatprep.subr.mxu0 0.0
    %1172 = vmatpush1.msra.mxu0 0.0
    %1173 = vmatprep.subr.mxu0 0.0
    %1174 = vmatpush1.msra.mxu0 0.0
    %1175 = vmatprep.subr.mxu0 0.0
    %1176 = vmatpush1.msra.mxu0 0.0
    %1177 = vmatprep.subr.mxu0 0.0
    %1178 = vmatpush1.msra.mxu0 0.0
    %1179 = vmatprep.subr.mxu0 0.0
    %1180 = vmatpush1.msra.mxu0 0.0
    %1181 = vmatprep.subr.mxu0 0.0
    %1182 = vmatpush1.msra.mxu0 0.0
    %1183 = vmatprep.subr.mxu0 0.0
    %1184 = vmatpush1.msra.mxu0 0.0
    %1185 = vmatprep.subr.mxu0 0.0
    %1186 = vmatpush1.msra.mxu0 0.0
    %1187 = vmatprep.subr.mxu0 0.0
    %1188 = vmatpush1.msra.mxu0 0.0
    %1189 = vmatprep.subr.mxu0 0.0
    %1190 = vmatpush1.msra.mxu0 0.0
    %1191 = vmatprep.subr.mxu0 0.0
    %1192 = vmatpush1.msra.mxu0 0.0
    %1193 = vmatprep.subr.mxu0 0.0
    %1194 = vmatpush1.msra.mxu0 0.0
    %1195 = vmatprep.subr.mxu0 0.0
    %1196 = vmatpush1.msra.mxu0 0.0
    %1197 = vmatprep.subr.mxu0 0.0
    %1198 = vmatpush1.msra.mxu0 0.0
    %1199 = vmatprep.subr.mxu0 0.0
    %1200 = vmatpush1.msra.mxu0 0.0
    %1201 = vmatprep.subr.mxu0 0.0
    %1202 = vmatpush1.msra.mxu0 0.0
    %1203 = vmatprep.subr.mxu0 0.0
    %1204 = vmatpush1.msra.mxu0 0.0
    %1205 = vmatprep.mubr.f32.mxu0 0.0
    %1206 = vmatmul.mubr.f32.gmra.mrb[0].mxu0 %v1136
    %v1207 = vpop.f32.mrb[0].mxu0
    %v1208 = vadd.f32 0.0, %v1207
    %v1209 = vpop.f32.mrb[0].mxu0
    %1210 = vmatprep.mubr.f32.mxu0 0.0
    %1211 = vmatmul.mubr.f32.gmra.mrb[0].mxu0 %v1139
    %v1212 = vpop.f32.mrb[0].mxu0
    %v1213 = vadd.f32 0.0, %v1212
    %v1214 = vpop.f32.mrb[0].mxu0
    %1215 = vdwg.mxu0
    %v1216 = vadd.f32 %v921, %v1208
    %v1217 = vadd.f32 %v926, %v1213
    %1218 = vrot.lane.b32.xlu0 %v127, 32
    %v1219 = vpop.permute.xlu0 %1218
    %1220 = vrot.lane.b32.xlu0 %v132, 32
    %v1221 = vpop.permute.xlu0 %1220
    %1222 = vrot.lane.b32.xlu0 %v235, 32
    %v1223 = vpop.permute.xlu0 %1222
    %1224 = vrot.lane.b32.xlu0 %v240, 32
    %v1225 = vpop.permute.xlu0 %1224
    %v1226 = vsel %vm361, %v1219, 0
    %v1228 = vsel %vm361, %v1221, 0
    %v1230 = vsel %vm361, %v1223, 0
    %v1232 = vsel %vm361, %v1225, 0
    %1234 = vmatprep.subr.mxu0 0.0
    %1235 = vmatpush1.xpose.msra.mxu0 %v1230
    %1236 = vmatprep.subr.mxu0 0.0
    %1237 = vmatpush1.xpose.msra.mxu0 %v1232
    %1238 = vmatprep.subr.mxu0 0.0
    %1239 = vmatpush1.xpose.msra.mxu0 0.0
    %1240 = vmatprep.subr.mxu0 0.0
    %1241 = vmatpush1.xpose.msra.mxu0 0.0
    %1242 = vmatprep.subr.mxu0 0.0
    %1243 = vmatpush1.xpose.msra.mxu0 0.0
    %1244 = vmatprep.subr.mxu0 0.0
    %1245 = vmatpush1.xpose.msra.mxu0 0.0
    %1246 = vmatprep.subr.mxu0 0.0
    %1247 = vmatpush1.xpose.msra.mxu0 0.0
    %1248 = vmatprep.subr.mxu0 0.0
    %1249 = vmatpush1.xpose.msra.mxu0 0.0
    %1250 = vmatprep.subr.mxu0 0.0
    %1251 = vmatpush1.xpose.msra.mxu0 0.0
    %1252 = vmatprep.subr.mxu0 0.0
    %1253 = vmatpush1.xpose.msra.mxu0 0.0
    %1254 = vmatprep.subr.mxu0 0.0
    %1255 = vmatpush1.xpose.msra.mxu0 0.0
    %1256 = vmatprep.subr.mxu0 0.0
    %1257 = vmatpush1.xpose.msra.mxu0 0.0
    %1258 = vmatprep.subr.mxu0 0.0
    %1259 = vmatpush1.xpose.msra.mxu0 0.0
    %1260 = vmatprep.subr.mxu0 0.0
    %1261 = vmatpush1.xpose.msra.mxu0 0.0
    %1262 = vmatprep.subr.mxu0 0.0
    %1263 = vmatpush1.xpose.msra.mxu0 0.0
    %1264 = vmatprep.subr.mxu0 0.0
    %1265 = vmatpush1.xpose.msra.mxu0 0.0
    %1266 = vmatprep.subr.mxu0 0.0
    %1267 = vmatpush1.xpose.msra.mxu0 0.0
    %1268 = vmatprep.subr.mxu0 0.0
    %1269 = vmatpush1.xpose.msra.mxu0 0.0
    %1270 = vmatprep.subr.mxu0 0.0
    %1271 = vmatpush1.xpose.msra.mxu0 0.0
    %1272 = vmatprep.subr.mxu0 0.0
    %1273 = vmatpush1.xpose.msra.mxu0 0.0
    %1274 = vmatprep.subr.mxu0 0.0
    %1275 = vmatpush1.xpose.msra.mxu0 0.0
    %1276 = vmatprep.subr.mxu0 0.0
    %1277 = vmatpush1.xpose.msra.mxu0 0.0
    %1278 = vmatprep.subr.mxu0 0.0
    %1279 = vmatpush1.xpose.msra.mxu0 0.0
    %1280 = vmatprep.subr.mxu0 0.0
    %1281 = vmatpush1.xpose.msra.mxu0 0.0
    %1282 = vmatprep.subr.mxu0 0.0
    %1283 = vmatpush1.xpose.msra.mxu0 0.0
    %1284 = vmatprep.subr.mxu0 0.0
    %1285 = vmatpush1.xpose.msra.mxu0 0.0
    %1286 = vmatprep.subr.mxu0 0.0
    %1287 = vmatpush1.xpose.msra.mxu0 0.0
    %1288 = vmatprep.subr.mxu0 0.0
    %1289 = vmatpush1.xpose.msra.mxu0 0.0
    %1290 = vmatprep.subr.mxu0 0.0
    %1291 = vmatpush1.xpose.msra.mxu0 0.0
    %1292 = vmatprep.subr.mxu0 0.0
    %1293 = vmatpush1.xpose.msra.mxu0 0.0
    %1294 = vmatprep.subr.mxu0 0.0
    %1295 = vmatpush1.xpose.msra.mxu0 0.0
    %1296 = vmatprep.subr.mxu0 0.0
    %1297 = vmatpush1.xpose.msra.mxu0 0.0
    %1298 = vmatprep.mubr.f32.mxu0 0.0
    %1299 = vmatmul.mubr.f32.gmra.mrb[0].mxu0 %v1226
    %v1300 = vpop.f32.mrb[0].mxu0
    %v1301 = vadd.f32 0.0, %v1300
    %v1302 = vpop.f32.mrb[0].mxu0
    %1303 = vmatprep.mubr.f32.mxu0 0.0
    %1304 = vmatmul.mubr.f32.gmra.mrb[0].mxu0 %v1228
    %v1305 = vpop.f32.mrb[0].mxu0
    %v1306 = vadd.f32 0.0, %v1305
    %v1307 = vpop.f32.mrb[0].mxu0
    %1308 = vdwg.mxu0
    %v1309 = vmul.f32 %v1301, 0.17677669
    %v1310 = vmul.f32 %v1306, 0.17677669
    %v1311 = vsel %vm451, %v1309, -inf
    %1312 = vmax.xlane.f32.xlu0 %v1311
    %v1313 = vpop.xlane.xlu0 %1312
    %v1314 = vsel %vm451, %v1310, -inf
    %1315 = vmax.xlane.f32.xlu0 %v1314
    %v1316 = vpop.xlane.xlu0 %1315
    %v1317 = vsub.f32 %v1309, %v1313
    %v1318 = vsub.f32 %v1310, %v1316
    %v1319 = vmul.f32 %v1317, 1.442695
    %v1320 = vpow.pop %v1319
    %v1321 = vmul.f32 %v1318, 1.442695
    %v1322 = vpow.pop %v1321
    %v1323 = vsel %vm451, %v1320, 0.0
    %1324 = vadd.xlane.f32.xlu0 %v1323
    %v1325 = vpop.xlane.xlu0 %1324
    %v1326 = vsel %vm451, %v1322, 0.0
    %1327 = vadd.xlane.f32.xlu0 %v1326
    %v1328 = vpop.xlane.xlu0 %1327
    %v1329 = vrcp.pop %v1325
    %v1330 = vrcp.pop %v1328
    %v1331 = vmul.f32 %v1320, %v1329
    %v1332 = vmul.f32 %v1322, %v1330
    %1333 = vrot.lane.b32.xlu0 %v343, 32
    %v1334 = vpop.permute.xlu0 %1333
    %1335 = vrot.lane.b32.xlu0 %v348, 32
    %v1336 = vpop.permute.xlu0 %1335
    %v1340 = vsel %vm451, %v1331, 0
    %v1343 = vsel %vm451, %v1332, 0
    %1345 = vmatprep.subr.mxu0 0.0
    %1346 = vmatpush1.msra.mxu0 %v1334
    %1347 = vmatprep.subr.mxu0 0.0
    %1348 = vmatpush1.msra.mxu0 %v1336
    %1349 = vmatprep.subr.mxu0 0.0
    %1350 = vmatpush1.msra.mxu0 0.0
    %1351 = vmatprep.subr.mxu0 0.0
    %1352 = vmatpush1.msra.mxu0 0.0
    %1353 = vmatprep.subr.mxu0 0.0
    %1354 = vmatpush1.msra.mxu0 0.0
    %1355 = vmatprep.subr.mxu0 0.0
    %1356 = vmatpush1.msra.mxu0 0.0
    %1357 = vmatprep.subr.mxu0 0.0
    %1358 = vmatpush1.msra.mxu0 0.0
    %1359 = vmatprep.subr.mxu0 0.0
    %1360 = vmatpush1.msra.mxu0 0.0
    %1361 = vmatprep.subr.mxu0 0.0
    %1362 = vmatpush1.msra.mxu0 0.0
    %1363 = vmatprep.subr.mxu0 0.0
    %1364 = vmatpush1.msra.mxu0 0.0
    %1365 = vmatprep.subr.mxu0 0.0
    %1366 = vmatpush1.msra.mxu0 0.0
    %1367 = vmatprep.subr.mxu0 0.0
    %1368 = vmatpush1.msra.mxu0 0.0
    %1369 = vmatprep.subr.mxu0 0.0
    %1370 = vmatpush1.msra.mxu0 0.0
    %1371 = vmatprep.subr.mxu0 0.0
    %1372 = vmatpush1.msra.mxu0 0.0
    %1373 = vmatprep.subr.mxu0 0.0
    %1374 = vmatpush1.msra.mxu0 0.0
    %1375 = vmatprep.subr.mxu0 0.0
    %1376 = vmatpush1.msra.mxu0 0.0
    %1377 = vmatprep.subr.mxu0 0.0
    %1378 = vmatpush1.msra.mxu0 0.0
    %1379 = vmatprep.subr.mxu0 0.0
    %1380 = vmatpush1.msra.mxu0 0.0
    %1381 = vmatprep.subr.mxu0 0.0
    %1382 = vmatpush1.msra.mxu0 0.0
    %1383 = vmatprep.subr.mxu0 0.0
    %1384 = vmatpush1.msra.mxu0 0.0
    %1385 = vmatprep.subr.mxu0 0.0
    %1386 = vmatpush1.msra.mxu0 0.0
    %1387 = vmatprep.subr.mxu0 0.0
    %1388 = vmatpush1.msra.mxu0 0.0
    %1389 = vmatprep.subr.mxu0 0.0
    %1390 = vmatpush1.msra.mxu0 0.0
    %1391 = vmatprep.subr.mxu0 0.0
    %1392 = vmatpush1.msra.mxu0 0.0
    %1393 = vmatprep.subr.mxu0 0.0
    %1394 = vmatpush1.msra.mxu0 0.0
    %1395 = vmatprep.subr.mxu0 0.0
    %1396 = vmatpush1.msra.mxu0 0.0
    %1397 = vmatprep.subr.mxu0 0.0
    %1398 = vmatpush1.msra.mxu0 0.0
    %1399 = vmatprep.subr.mxu0 0.0
    %1400 = vmatpush1.msra.mxu0 0.0
    %1401 = vmatprep.subr.mxu0 0.0
    %1402 = vmatpush1.msra.mxu0 0.0
    %1403 = vmatprep.subr.mxu0 0.0
    %1404 = vmatpush1.msra.mxu0 0.0
    %1405 = vmatprep.subr.mxu0 0.0
    %1406 = vmatpush1.msra.mxu0 0.0
    %1407 = vmatprep.subr.mxu0 0.0
    %1408 = vmatpush1.msra.mxu0 0.0
    %1409 = vmatprep.mubr.f32.mxu0 0.0
    %1410 = vmatmul.mubr.f32.gmra.mrb[0].mxu0 %v1340
    %v1411 = vpop.f32.mrb[0].mxu0
    %v1412 = vadd.f32 0.0, %v1411
    %v1413 = vpop.f32.mrb[0].mxu0
    %1414 = vmatprep.mubr.f32.mxu0 0.0
    %1415 = vmatmul.mubr.f32.gmra.mrb[0].mxu0 %v1343
    %v1416 = vpop.f32.mrb[0].mxu0
    %v1417 = vadd.f32 0.0, %v1416
    %v1418 = vpop.f32.mrb[0].mxu0
    %1419 = vdwg.mxu0
    %v1420 = vld [vmem:[%s7 + $0x60] sm:$0xff]
    %v1421 = vld [vmem:[%s7 + $0x68] sm:$0xff]
    %v1422 = vld [vmem:[%s7 + $0x70] sm:$0xff]
    %v1423 = vld [vmem:[%s7 + $0x78] sm:$0xff]
    %v1425 = vsel %vm361, %v1412, 0
    %v1428 = vsel %vm361, %v1417, 0
    %1430 = vmatprep.subr.mxu0 0.0
    %1431 = vmatpush1.msra.mxu0 %v1420
    %1432 = vmatprep.subr.mxu0 0.0
    %1433 = vmatpush1.msra.mxu0 %v1421
    %1434 = vmatprep.subr.mxu0 0.0
    %1435 = vmatpush1.msra.mxu0 %v1422
    %1436 = vmatprep.subr.mxu0 0.0
    %1437 = vmatpush1.msra.mxu0 %v1423
    %1438 = vmatprep.subr.mxu0 0.0
    %1439 = vmatpush1.msra.mxu0 0.0
    %1440 = vmatprep.subr.mxu0 0.0
    %1441 = vmatpush1.msra.mxu0 0.0
    %1442 = vmatprep.subr.mxu0 0.0
    %1443 = vmatpush1.msra.mxu0 0.0
    %1444 = vmatprep.subr.mxu0 0.0
    %1445 = vmatpush1.msra.mxu0 0.0
    %1446 = vmatprep.subr.mxu0 0.0
    %1447 = vmatpush1.msra.mxu0 0.0
    %1448 = vmatprep.subr.mxu0 0.0
    %1449 = vmatpush1.msra.mxu0 0.0
    %1450 = vmatprep.subr.mxu0 0.0
    %1451 = vmatpush1.msra.mxu0 0.0
    %1452 = vmatprep.subr.mxu0 0.0
    %1453 = vmatpush1.msra.mxu0 0.0
    %1454 = vmatprep.subr.mxu0 0.0
    %1455 = vmatpush1.msra.mxu0 0.0
    %1456 = vmatprep.subr.mxu0 0.0
    %1457 = vmatpush1.msra.mxu0 0.0
    %1458 = vmatprep.subr.mxu0 0.0
    %1459 = vmatpush1.msra.mxu0 0.0
    %1460 = vmatprep.subr.mxu0 0.0
    %1461 = vmatpush1.msra.mxu0 0.0
    %1462 = vmatprep.subr.mxu0 0.0
    %1463 = vmatpush1.msra.mxu0 0.0
    %1464 = vmatprep.subr.mxu0 0.0
    %1465 = vmatpush1.msra.mxu0 0.0
    %1466 = vmatprep.subr.mxu0 0.0
    %1467 = vmatpush1.msra.mxu0 0.0
    %1468 = vmatprep.subr.mxu0 0.0
    %1469 = vmatpush1.msra.mxu0 0.0
    %1470 = vmatprep.subr.mxu0 0.0
    %1471 = vmatpush1.msra.mxu0 0.0
    %1472 = vmatprep.subr.mxu0 0.0
    %1473 = vmatpush1.msra.mxu0 0.0
    %1474 = vmatprep.subr.mxu0 0.0
    %1475 = vmatpush1.msra.mxu0 0.0
    %1476 = vmatprep.subr.mxu0 0.0
    %1477 = vmatpush1.msra.mxu0 0.0
    %1478 = vmatprep.subr.mxu0 0.0
    %1479 = vmatpush1.msra.mxu0 0.0
    %1480 = vmatprep.subr.mxu0 0.0
    %1481 = vmatpush1.msra.mxu0 0.0
    %1482 = vmatprep.subr.mxu0 0.0
    %1483 = vmatpush1.msra.mxu0 0.0
    %1484 = vmatprep.subr.mxu0 0.0
    %1485 = vmatpush1.msra.mxu0 0.0
    %1486 = vmatprep.subr.mxu0 0.0
    %1487 = vmatpush1.msra.mxu0 0.0
    %1488 = vmatprep.subr.mxu0 0.0
    %1489 = vmatpush1.msra.mxu0 0.0
    %1490 = vmatprep.subr.mxu0 0.0
    %1491 = vmatpush1.msra.mxu0 0.0
    %1492 = vmatprep.subr.mxu0 0.0
    %1493 = vmatpush1.msra.mxu0 0.0
    %1494 = vmatprep.mubr.f32.mxu0 0.0
    %1495 = vmatmul.mubr.f32.gmra.mrb[0].mxu0 %v1425
    %v1496 = vpop.f32.mrb[0].mxu0
    %v1497 = vadd.f32 0.0, %v1496
    %v1498 = vpop.f32.mrb[0].mxu0
    %1499 = vmatprep.mubr.f32.mxu0 0.0
    %1500 = vmatmul.mubr.f32.gmra.mrb[0].mxu0 %v1428
    %v1501 = vpop.f32.mrb[0].mxu0
    %v1502 = vadd.f32 0.0, %v1501
    %v1503 = vpop.f32.mrb[0].mxu0
    %1504 = vdwg.mxu0
    %v1505 = vadd.f32 %v1216, %v1497
    %v1506 = vadd.f32 %v1217, %v1502
    %v1507 = vld [vmem:[%s8] sm:$0x1]
    %v1509 = vlaneseq
    %v1510 = vshrl.u32 %v1509, 7
    %v1511 = vsub.s32 0, %v1510
    %v1512 = vrot.slane %v1507, %v1511
    %v1514 = vadd.f32 %v1505, %v1512
    %v1515 = vadd.f32 %v1506, %v1512
    %1516 = vst [vmem:[#allocation2] sm:$0xff] %v1514
    %1517 = vst [vmem:[#allocation2 + $0x8] sm:$0xff] %v1515
    %v1519 = vsel %vm361, %v137, 0
    %v1522 = vsel %vm361, %v142, 0
    %v1525 = vsel %vm361, %v245, 0
    %v1528 = vsel %vm361, %v250, 0
    %1530 = vmatprep.subr.mxu0 0.0
    %1531 = vmatpush1.xpose.msra.mxu0 %v1525
    %1532 = vmatprep.subr.mxu0 0.0
    %1533 = vmatpush1.xpose.msra.mxu0 %v1528
    %1534 = vmatprep.subr.mxu0 0.0
    %1535 = vmatpush1.xpose.msra.mxu0 0.0
    %1536 = vmatprep.subr.mxu0 0.0
    %1537 = vmatpush1.xpose.msra.mxu0 0.0
    %1538 = vmatprep.subr.mxu0 0.0
    %1539 = vmatpush1.xpose.msra.mxu0 0.0
    %1540 = vmatprep.subr.mxu0 0.0
    %1541 = vmatpush1.xpose.msra.mxu0 0.0
    %1542 = vmatprep.subr.mxu0 0.0
    %1543 = vmatpush1.xpose.msra.mxu0 0.0
    %1544 = vmatprep.subr.mxu0 0.0
    %1545 = vmatpush1.xpose.msra.mxu0 0.0
    %1546 = vmatprep.subr.mxu0 0.0
    %1547 = vmatpush1.xpose.msra.mxu0 0.0
    %1548 = vmatprep.subr.mxu0 0.0
    %1549 = vmatpush1.xpose.msra.mxu0 0.0
    %1550 = vmatprep.subr.mxu0 0.0
    %1551 = vmatpush1.xpose.msra.mxu0 0.0
    %1552 = vmatprep.subr.mxu0 0.0
    %1553 = vmatpush1.xpose.msra.mxu0 0.0
    %1554 = vmatprep.subr.mxu0 0.0
    %1555 = vmatpush1.xpose.msra.mxu0 0.0
    %1556 = vmatprep.subr.mxu0 0.0
    %1557 = vmatpush1.xpose.msra.mxu0 0.0
    %1558 = vmatprep.subr.mxu0 0.0
    %1559 = vmatpush1.xpose.msra.mxu0 0.0
    %1560 = vmatprep.subr.mxu0 0.0
    %1561 = vmatpush1.xpose.msra.mxu0 0.0
    %1562 = vmatprep.subr.mxu0 0.0
    %1563 = vmatpush1.xpose.msra.mxu0 0.0
    %1564 = vmatprep.subr.mxu0 0.0
    %1565 = vmatpush1.xpose.msra.mxu0 0.0
    %1566 = vmatprep.subr.mxu0 0.0
    %1567 = vmatpush1.xpose.msra.mxu0 0.0
    %1568 = vmatprep.subr.mxu0 0.0
    %1569 = vmatpush1.xpose.msra.mxu0 0.0
    %1570 = vmatprep.subr.mxu0 0.0
    %1571 = vmatpush1.xpose.msra.mxu0 0.0
    %1572 = vmatprep.subr.mxu0 0.0
    %1573 = vmatpush1.xpose.msra.mxu0 0.0
    %1574 = vmatprep.subr.mxu0 0.0
    %1575 = vmatpush1.xpose.msra.mxu0 0.0
    %1576 = vmatprep.subr.mxu0 0.0
    %1577 = vmatpush1.xpose.msra.mxu0 0.0
    %1578 = vmatprep.subr.mxu0 0.0
    %1579 = vmatpush1.xpose.msra.mxu0 0.0
    %1580 = vmatprep.subr.mxu0 0.0
    %1581 = vmatpush1.xpose.msra.mxu0 0.0
    %1582 = vmatprep.subr.mxu0 0.0
    %1583 = vmatpush1.xpose.msra.mxu0 0.0
    %1584 = vmatprep.subr.mxu0 0.0
    %1585 = vmatpush1.xpose.msra.mxu0 0.0
    %1586 = vmatprep.subr.mxu0 0.0
    %1587 = vmatpush1.xpose.msra.mxu0 0.0
    %1588 = vmatprep.subr.mxu0 0.0
    %1589 = vmatpush1.xpose.msra.mxu0 0.0
    %1590 = vmatprep.subr.mxu0 0.0
    %1591 = vmatpush1.xpose.msra.mxu0 0.0
    %1592 = vmatprep.subr.mxu0 0.0
    %1593 = vmatpush1.xpose.msra.mxu0 0.0
    %1594 = vmatprep.mubr.f32.mxu0 0.0
    %1595 = vmatmul.mubr.f32.gmra.mrb[0].mxu0 %v1519
    %v1596 = vpop.f32.mrb[0].mxu0
    %v1597 = vadd.f32 0.0, %v1596
    %v1598 = vpop.f32.mrb[0].mxu0
    %1599 = vmatprep.mubr.f32.mxu0 0.0
    %1600 = vmatmul.mubr.f32.gmra.mrb[0].mxu0 %v1522
    %v1601 = vpop.f32.mrb[0].mxu0
    %v1602 = vadd.f32 0.0, %v1601
    %v1603 = vpop.f32.mrb[0].mxu0
    %1604 = vdwg.mxu0
    %v1605 = vmul.f32 %v1597, 0.17677669
    %v1606 = vmul.f32 %v1602, 0.17677669
    %v1607 = vsel %vm451, %v1605, -inf
    %1608 = vmax.xlane.f32.xlu0 %v1607
    %v1609 = vpop.xlane.xlu0 %1608
    %v1610 = vsel %vm451, %v1606, -inf
    %1611 = vmax.xlane.f32.xlu0 %v1610
    %v1612 = vpop.xlane.xlu0 %1611
    %v1613 = vsub.f32 %v1605, %v1609
    %v1614 = vsub.f32 %v1606, %v1612
    %v1615 = vmul.f32 %v1613, 1.442695
    %v1616 = vpow.pop %v1615
    %v1617 = vmul.f32 %v1614, 1.442695
    %v1618 = vpow.pop %v1617
    %v1619 = vsel %vm451, %v1616, 0.0
    %1620 = vadd.xlane.f32.xlu0 %v1619
    %v1621 = vpop.xlane.xlu0 %1620
    %v1622 = vsel %vm451, %v1618, 0.0
    %1623 = vadd.xlane.f32.xlu0 %v1622
    %v1624 = vpop.xlane.xlu0 %1623
    %v1625 = vrcp.pop %v1621
    %v1626 = vrcp.pop %v1624
    %v1627 = vmul.f32 %v1616, %v1625
    %v1628 = vmul.f32 %v1618, %v1626
    %v1630 = vsel %vm451, %v1627, 0
    %v1633 = vsel %vm451, %v1628, 0
    %1635 = vmatprep.subr.mxu0 0.0
    %1636 = vmatpush1.msra.mxu0 %v353
    %1637 = vmatprep.subr.mxu0 0.0
    %1638 = vmatpush1.msra.mxu0 %v358
    %1639 = vmatprep.subr.mxu0 0.0
    %1640 = vmatpush1.msra.mxu0 0.0
    %1641 = vmatprep.subr.mxu0 0.0
    %1642 = vmatpush1.msra.mxu0 0.0
    %1643 = vmatprep.subr.mxu0 0.0
    %1644 = vmatpush1.msra.mxu0 0.0
    %1645 = vmatprep.subr.mxu0 0.0
    %1646 = vmatpush1.msra.mxu0 0.0
    %1647 = vmatprep.subr.mxu0 0.0
    %1648 = vmatpush1.msra.mxu0 0.0
    %1649 = vmatprep.subr.mxu0 0.0
    %1650 = vmatpush1.msra.mxu0 0.0
    %1651 = vmatprep.subr.mxu0 0.0
    %1652 = vmatpush1.msra.mxu0 0.0
    %1653 = vmatprep.subr.mxu0 0.0
    %1654 = vmatpush1.msra.mxu0 0.0
    %1655 = vmatprep.subr.mxu0 0.0
    %1656 = vmatpush1.msra.mxu0 0.0
    %1657 = vmatprep.subr.mxu0 0.0
    %1658 = vmatpush1.msra.mxu0 0.0
    %1659 = vmatprep.subr.mxu0 0.0
    %1660 = vmatpush1.msra.mxu0 0.0
    %1661 = vmatprep.subr.mxu0 0.0
    %1662 = vmatpush1.msra.mxu0 0.0
    %1663 = vmatprep.subr.mxu0 0.0
    %1664 = vmatpush1.msra.mxu0 0.0
    %1665 = vmatprep.subr.mxu0 0.0
    %1666 = vmatpush1.msra.mxu0 0.0
    %1667 = vmatprep.subr.mxu0 0.0
    %1668 = vmatpush1.msra.mxu0 0.0
    %1669 = vmatprep.subr.mxu0 0.0
    %1670 = vmatpush1.msra.mxu0 0.0
    %1671 = vmatprep.subr.mxu0 0.0
    %1672 = vmatpush1.msra.mxu0 0.0
    %1673 = vmatprep.subr.mxu0 0.0
    %1674 = vmatpush1.msra.mxu0 0.0
    %1675 = vmatprep.subr.mxu0 0.0
    %1676 = vmatpush1.msra.mxu0 0.0
    %1677 = vmatprep.subr.mxu0 0.0
    %1678 = vmatpush1.msra.mxu0 0.0
    %1679 = vmatprep.subr.mxu0 0.0
    %1680 = vmatpush1.msra.mxu0 0.0
    %1681 = vmatprep.subr.mxu0 0.0
    %1682 = vmatpush1.msra.mxu0 0.0
    %1683 = vmatprep.subr.mxu0 0.0
    %1684 = vmatpush1.msra.mxu0 0.0
    %1685 = vmatprep.subr.mxu0 0.0
    %1686 = vmatpush1.msra.mxu0 0.0
    %1687 = vmatprep.subr.mxu0 0.0
    %1688 = vmatpush1.msra.mxu0 0.0
    %1689 = vmatprep.subr.mxu0 0.0
    %1690 = vmatpush1.msra.mxu0 0.0
    %1691 = vmatprep.subr.mxu0 0.0
    %1692 = vmatpush1.msra.mxu0 0.0
    %1693 = vmatprep.subr.mxu0 0.0
    %1694 = vmatpush1.msra.mxu0 0.0
    %1695 = vmatprep.subr.mxu0 0.0
    %1696 = vmatpush1.msra.mxu0 0.0
    %1697 = vmatprep.subr.mxu0 0.0
    %1698 = vmatpush1.msra.mxu0 0.0
    %1699 = vmatprep.mubr.f32.mxu0 0.0
    %1700 = vmatmul.mubr.f32.gmra.mrb[0].mxu0 %v1630
    %v1701 = vpop.f32.mrb[0].mxu0
    %v1702 = vadd.f32 0.0, %v1701
    %v1703 = vpop.f32.mrb[0].mxu0
    %1704 = vmatprep.mubr.f32.mxu0 0.0
    %1705 = vmatmul.mubr.f32.gmra.mrb[0].mxu0 %v1633
    %v1706 = vpop.f32.mrb[0].mxu0
    %v1707 = vadd.f32 0.0, %v1706
    %v1708 = vpop.f32.mrb[0].mxu0
    %1709 = vdwg.mxu0
    %v1710 = vld [vmem:[%s7] sm:$0xff]
    %v1711 = vld [vmem:[%s7 + $0x8] sm:$0xff]
    %v1712 = vld [vmem:[%s7 + $0x10] sm:$0xff]
    %v1713 = vld [vmem:[%s7 + $0x18] sm:$0xff]
    %1714 = vrot.lane.b32.xlu0 %v137, 96
    %v1715 = vpop.permute.xlu0 %1714
    %1716 = vrot.lane.b32.xlu0 %v142, 96
    %v1717 = vpop.permute.xlu0 %1716
    %1718 = vrot.lane.b32.xlu0 %v245, 96
    %v1719 = vpop.permute.xlu0 %1718
    %1720 = vrot.lane.b32.xlu0 %v250, 96
    %v1721 = vpop.permute.xlu0 %1720
    %v1722 = vsel %vm361, %v1715, 0
    %v1724 = vsel %vm361, %v1717, 0
    %v1726 = vsel %vm361, %v1719, 0
    %v1728 = vsel %vm361, %v1721, 0
    %1730 = vmatprep.subr.mxu0 0.0
    %1731 = vmatpush1.xpose.msra.mxu0 %v1726
    %1732 = vmatprep.subr.mxu0 0.0
    %1733 = vmatpush1.xpose.msra.mxu0 %v1728
    %1734 = vmatprep.subr.mxu0 0.0
    %1735 = vmatpush1.xpose.msra.mxu0 0.0
    %1736 = vmatprep.subr.mxu0 0.0
    %1737 = vmatpush1.xpose.msra.mxu0 0.0
    %1738 = vmatprep.subr.mxu0 0.0
    %1739 = vmatpush1.xpose.msra.mxu0 0.0
    %1740 = vmatprep.subr.mxu0 0.0
    %1741 = vmatpush1.xpose.msra.mxu0 0.0
    %1742 = vmatprep.subr.mxu0 0.0
    %1743 = vmatpush1.xpose.msra.mxu0 0.0
    %1744 = vmatprep.subr.mxu0 0.0
    %1745 = vmatpush1.xpose.msra.mxu0 0.0
    %1746 = vmatprep.subr.mxu0 0.0
    %1747 = vmatpush1.xpose.msra.mxu0 0.0
    %1748 = vmatprep.subr.mxu0 0.0
    %1749 = vmatpush1.xpose.msra.mxu0 0.0
    %1750 = vmatprep.subr.mxu0 0.0
    %1751 = vmatpush1.xpose.msra.mxu0 0.0
    %1752 = vmatprep.subr.mxu0 0.0
    %1753 = vmatpush1.xpose.msra.mxu0 0.0
    %1754 = vmatprep.subr.mxu0 0.0
    %1755 = vmatpush1.xpose.msra.mxu0 0.0
    %1756 = vmatprep.subr.mxu0 0.0
    %1757 = vmatpush1.xpose.msra.mxu0 0.0
    %1758 = vmatprep.subr.mxu0 0.0
    %1759 = vmatpush1.xpose.msra.mxu0 0.0
    %1760 = vmatprep.subr.mxu0 0.0
    %1761 = vmatpush1.xpose.msra.mxu0 0.0
    %1762 = vmatprep.subr.mxu0 0.0
    %1763 = vmatpush1.xpose.msra.mxu0 0.0
    %1764 = vmatprep.subr.mxu0 0.0
    %1765 = vmatpush1.xpose.msra.mxu0 0.0
    %1766 = vmatprep.subr.mxu0 0.0
    %1767 = vmatpush1.xpose.msra.mxu0 0.0
    %1768 = vmatprep.subr.mxu0 0.0
    %1769 = vmatpush1.xpose.msra.mxu0 0.0
    %1770 = vmatprep.subr.mxu0 0.0
    %1771 = vmatpush1.xpose.msra.mxu0 0.0
    %1772 = vmatprep.subr.mxu0 0.0
    %1773 = vmatpush1.xpose.msra.mxu0 0.0
    %1774 = vmatprep.subr.mxu0 0.0
    %1775 = vmatpush1.xpose.msra.mxu0 0.0
    %1776 = vmatprep.subr.mxu0 0.0
    %1777 = vmatpush1.xpose.msra.mxu0 0.0
    %1778 = vmatprep.subr.mxu0 0.0
    %1779 = vmatpush1.xpose.msra.mxu0 0.0
    %1780 = vmatprep.subr.mxu0 0.0
    %1781 = vmatpush1.xpose.msra.mxu0 0.0
    %1782 = vmatprep.subr.mxu0 0.0
    %1783 = vmatpush1.xpose.msra.mxu0 0.0
    %1784 = vmatprep.subr.mxu0 0.0
    %1785 = vmatpush1.xpose.msra.mxu0 0.0
    %1786 = vmatprep.subr.mxu0 0.0
    %1787 = vmatpush1.xpose.msra.mxu0 0.0
    %1788 = vmatprep.subr.mxu0 0.0
    %1789 = vmatpush1.xpose.msra.mxu0 0.0
    %1790 = vmatprep.subr.mxu0 0.0
    %1791 = vmatpush1.xpose.msra.mxu0 0.0
    %1792 = vmatprep.subr.mxu0 0.0
    %1793 = vmatpush1.xpose.msra.mxu0 0.0
    %1794 = vmatprep.mubr.f32.mxu0 0.0
    %1795 = vmatmul.mubr.f32.gmra.mrb[0].mxu0 %v1722
    %v1796 = vpop.f32.mrb[0].mxu0
    %v1797 = vadd.f32 0.0, %v1796
    %v1798 = vpop.f32.mrb[0].mxu0
    %1799 = vmatprep.mubr.f32.mxu0 0.0
    %1800 = vmatmul.mubr.f32.gmra.mrb[0].mxu0 %v1724
    %v1801 = vpop.f32.mrb[0].mxu0
    %v1802 = vadd.f32 0.0, %v1801
    %v1803 = vpop.f32.mrb[0].mxu0
    %1804 = vdwg.mxu0
    %v1805 = vmul.f32 %v1797, 0.17677669
    %v1806 = vmul.f32 %v1802, 0.17677669
    %v1807 = vsel %vm451, %v1805, -inf
    %1808 = vmax.xlane.f32.xlu0 %v1807
    %v1809 = vpop.xlane.xlu0 %1808
    %v1810 = vsel %vm451, %v1806, -inf
    %1811 = vmax.xlane.f32.xlu0 %v1810
    %v1812 = vpop.xlane.xlu0 %1811
    %v1813 = vsub.f32 %v1805, %v1809
    %v1814 = vsub.f32 %v1806, %v1812
    %v1815 = vmul.f32 %v1813, 1.442695
    %v1816 = vpow.pop %v1815
    %v1817 = vmul.f32 %v1814, 1.442695
    %v1818 = vpow.pop %v1817
    %v1819 = vsel %vm451, %v1816, 0.0
    %1820 = vadd.xlane.f32.xlu0 %v1819
    %v1821 = vpop.xlane.xlu0 %1820
    %v1822 = vsel %vm451, %v1818, 0.0
    %1823 = vadd.xlane.f32.xlu0 %v1822
    %v1824 = vpop.xlane.xlu0 %1823
    %v1825 = vrcp.pop %v1821
    %v1826 = vrcp.pop %v1824
    %v1827 = vmul.f32 %v1816, %v1825
    %v1828 = vmul.f32 %v1818, %v1826
    %1831 = vrot.lane.b32.xlu0 %v353, 96
    %v1832 = vpop.permute.xlu0 %1831
    %1833 = vrot.lane.b32.xlu0 %v358, 96
    %v1834 = vpop.permute.xlu0 %1833
    %v1838 = vsel %vm451, %v1827, 0
    %v1841 = vsel %vm451, %v1828, 0
    %1843 = vmatprep.subr.mxu0 0.0
    %1844 = vmatpush1.msra.mxu0 %v1832
    %1845 = vmatprep.subr.mxu0 0.0
    %1846 = vmatpush1.msra.mxu0 %v1834
    %1847 = vmatprep.subr.mxu0 0.0
    %1848 = vmatpush1.msra.mxu0 0.0
    %1849 = vmatprep.subr.mxu0 0.0
    %1850 = vmatpush1.msra.mxu0 0.0
    %1851 = vmatprep.subr.mxu0 0.0
    %1852 = vmatpush1.msra.mxu0 0.0
    %1853 = vmatprep.subr.mxu0 0.0
    %1854 = vmatpush1.msra.mxu0 0.0
    %1855 = vmatprep.subr.mxu0 0.0
    %1856 = vmatpush1.msra.mxu0 0.0
    %1857 = vmatprep.subr.mxu0 0.0
    %1858 = vmatpush1.msra.mxu0 0.0
    %1859 = vmatprep.subr.mxu0 0.0
    %1860 = vmatpush1.msra.mxu0 0.0
    %1861 = vmatprep.subr.mxu0 0.0
    %1862 = vmatpush1.msra.mxu0 0.0
    %1863 = vmatprep.subr.mxu0 0.0
    %1864 = vmatpush1.msra.mxu0 0.0
    %1865 = vmatprep.subr.mxu0 0.0
    %1866 = vmatpush1.msra.mxu0 0.0
    %1867 = vmatprep.subr.mxu0 0.0
    %1868 = vmatpush1.msra.mxu0 0.0
    %1869 = vmatprep.subr.mxu0 0.0
    %1870 = vmatpush1.msra.mxu0 0.0
    %1871 = vmatprep.subr.mxu0 0.0
    %1872 = vmatpush1.msra.mxu0 0.0
    %1873 = vmatprep.subr.mxu0 0.0
    %1874 = vmatpush1.msra.mxu0 0.0
    %1875 = vmatprep.subr.mxu0 0.0
    %1876 = vmatpush1.msra.mxu0 0.0
    %1877 = vmatprep.subr.mxu0 0.0
    %1878 = vmatpush1.msra.mxu0 0.0
    %1879 = vmatprep.subr.mxu0 0.0
    %1880 = vmatpush1.msra.mxu0 0.0
    %1881 = vmatprep.subr.mxu0 0.0
    %1882 = vmatpush1.msra.mxu0 0.0
    %1883 = vmatprep.subr.mxu0 0.0
    %1884 = vmatpush1.msra.mxu0 0.0
    %1885 = vmatprep.subr.mxu0 0.0
    %1886 = vmatpush1.msra.mxu0 0.0
    %1887 = vmatprep.subr.mxu0 0.0
    %1888 = vmatpush1.msra.mxu0 0.0
    %1889 = vmatprep.subr.mxu0 0.0
    %1890 = vmatpush1.msra.mxu0 0.0
    %1891 = vmatprep.subr.mxu0 0.0
    %1892 = vmatpush1.msra.mxu0 0.0
    %1893 = vmatprep.subr.mxu0 0.0
    %1894 = vmatpush1.msra.mxu0 0.0
    %1895 = vmatprep.subr.mxu0 0.0
    %1896 = vmatpush1.msra.mxu0 0.0
    %1897 = vmatprep.subr.mxu0 0.0
    %1898 = vmatpush1.msra.mxu0 0.0
    %1899 = vmatprep.subr.mxu0 0.0
    %1900 = vmatpush1.msra.mxu0 0.0
    %1901 = vmatprep.subr.mxu0 0.0
    %1902 = vmatpush1.msra.mxu0 0.0
    %1903 = vmatprep.subr.mxu0 0.0
    %1904 = vmatpush1.msra.mxu0 0.0
    %1905 = vmatprep.subr.mxu0 0.0
    %1906 = vmatpush1.msra.mxu0 0.0
    %1907 = vmatprep.mubr.f32.mxu0 0.0
    %1908 = vmatmul.mubr.f32.gmra.mrb[0].mxu0 %v1838
    %v1909 = vpop.f32.mrb[0].mxu0
    %v1910 = vadd.f32 0.0, %v1909
    %v1911 = vpop.f32.mrb[0].mxu0
    %1912 = vmatprep.mubr.f32.mxu0 0.0
    %1913 = vmatmul.mubr.f32.gmra.mrb[0].mxu0 %v1841
    %v1914 = vpop.f32.mrb[0].mxu0
    %v1915 = vadd.f32 0.0, %v1914
    %v1916 = vpop.f32.mrb[0].mxu0
    %1917 = vdwg.mxu0
    %v1918 = vld [vmem:[%s7 + $0x20] sm:$0xff]
    %v1919 = vld [vmem:[%s7 + $0x28] sm:$0xff]
    %v1920 = vld [vmem:[%s7 + $0x30] sm:$0xff]
    %v1921 = vld [vmem:[%s7 + $0x38] sm:$0xff]
    %v1923 = vsel %vm361, %v1910, 0
    %v1926 = vsel %vm361, %v1915, 0
    %1928 = vmatprep.subr.mxu0 0.0
    %1929 = vmatpush1.msra.mxu0 %v1918
    %1930 = vmatprep.subr.mxu0 0.0
    %1931 = vmatpush1.msra.mxu0 %v1919
    %1932 = vmatprep.subr.mxu0 0.0
    %1933 = vmatpush1.msra.mxu0 %v1920
    %1934 = vmatprep.subr.mxu0 0.0
    %1935 = vmatpush1.msra.mxu0 %v1921
    %1936 = vmatprep.subr.mxu0 0.0
    %1937 = vmatpush1.msra.mxu0 0.0
    %1938 = vmatprep.subr.mxu0 0.0
    %1939 = vmatpush1.msra.mxu0 0.0
    %1940 = vmatprep.subr.mxu0 0.0
    %1941 = vmatpush1.msra.mxu0 0.0
    %1942 = vmatprep.subr.mxu0 0.0
    %1943 = vmatpush1.msra.mxu0 0.0
    %1944 = vmatprep.subr.mxu0 0.0
    %1945 = vmatpush1.msra.mxu0 0.0
    %1946 = vmatprep.subr.mxu0 0.0
    %1947 = vmatpush1.msra.mxu0 0.0
    %1948 = vmatprep.subr.mxu0 0.0
    %1949 = vmatpush1.msra.mxu0 0.0
    %1950 = vmatprep.subr.mxu0 0.0
    %1951 = vmatpush1.msra.mxu0 0.0
    %1952 = vmatprep.subr.mxu0 0.0
    %1953 = vmatpush1.msra.mxu0 0.0
    %1954 = vmatprep.subr.mxu0 0.0
    %1955 = vmatpush1.msra.mxu0 0.0
    %1956 = vmatprep.subr.mxu0 0.0
    %1957 = vmatpush1.msra.mxu0 0.0
    %1958 = vmatprep.subr.mxu0 0.0
    %1959 = vmatpush1.msra.mxu0 0.0
    %1960 = vmatprep.subr.mxu0 0.0
    %1961 = vmatpush1.msra.mxu0 0.0
    %1962 = vmatprep.subr.mxu0 0.0
    %1963 = vmatpush1.msra.mxu0 0.0
    %1964 = vmatprep.subr.mxu0 0.0
    %1965 = vmatpush1.msra.mxu0 0.0
    %1966 = vmatprep.subr.mxu0 0.0
    %1967 = vmatpush1.msra.mxu0 0.0
    %1968 = vmatprep.subr.mxu0 0.0
    %1969 = vmatpush1.msra.mxu0 0.0
    %1970 = vmatprep.subr.mxu0 0.0
    %1971 = vmatpush1.msra.mxu0 0.0
    %1972 = vmatprep.subr.mxu0 0.0
    %1973 = vmatpush1.msra.mxu0 0.0
    %1974 = vmatprep.subr.mxu0 0.0
    %1975 = vmatpush1.msra.mxu0 0.0
    %1976 = vmatprep.subr.mxu0 0.0
    %1977 = vmatpush1.msra.mxu0 0.0
    %1978 = vmatprep.subr.mxu0 0.0
    %1979 = vmatpush1.msra.mxu0 0.0
    %1980 = vmatprep.subr.mxu0 0.0
    %1981 = vmatpush1.msra.mxu0 0.0
    %1982 = vmatprep.subr.mxu0 0.0
    %1983 = vmatpush1.msra.mxu0 0.0
    %1984 = vmatprep.subr.mxu0 0.0
    %1985 = vmatpush1.msra.mxu0 0.0
    %1986 = vmatprep.subr.mxu0 0.0
    %1987 = vmatpush1.msra.mxu0 0.0
    %1988 = vmatprep.subr.mxu0 0.0
    %1989 = vmatpush1.msra.mxu0 0.0
    %1990 = vmatprep.subr.mxu0 0.0
    %1991 = vmatpush1.msra.mxu0 0.0
    %1992 = vmatprep.mubr.f32.mxu0 0.0
    %1993 = vmatmul.mubr.f32.gmra.mrb[0].mxu0 %v1923
    %v1994 = vpop.f32.mrb[0].mxu0
    %v1995 = vadd.f32 0.0, %v1994
    %v1996 = vpop.f32.mrb[0].mxu0
    %1997 = vmatprep.mubr.f32.mxu0 0.0
    %1998 = vmatmul.mubr.f32.gmra.mrb[0].mxu0 %v1926
    %v1999 = vpop.f32.mrb[0].mxu0
    %v2000 = vadd.f32 0.0, %v1999
    %v2001 = vpop.f32.mrb[0].mxu0
    %2002 = vdwg.mxu0
    %v2004 = vsel %vm361, %v1702, 0
    %v2007 = vsel %vm361, %v1707, 0
    %2009 = vmatprep.subr.mxu0 0.0
    %2010 = vmatpush1.msra.mxu0 %v1710
    %2011 = vmatprep.subr.mxu0 0.0
    %2012 = vmatpush1.msra.mxu0 %v1711
    %2013 = vmatprep.subr.mxu0 0.0
    %2014 = vmatpush1.msra.mxu0 %v1712
    %2015 = vmatprep.subr.mxu0 0.0
    %2016 = vmatpush1.msra.mxu0 %v1713
    %2017 = vmatprep.subr.mxu0 0.0
    %2018 = vmatpush1.msra.mxu0 0.0
    %2019 = vmatprep.subr.mxu0 0.0
    %2020 = vmatpush1.msra.mxu0 0.0
    %2021 = vmatprep.subr.mxu0 0.0
    %2022 = vmatpush1.msra.mxu0 0.0
    %2023 = vmatprep.subr.mxu0 0.0
    %2024 = vmatpush1.msra.mxu0 0.0
    %2025 = vmatprep.subr.mxu0 0.0
    %2026 = vmatpush1.msra.mxu0 0.0
    %2027 = vmatprep.subr.mxu0 0.0
    %2028 = vmatpush1.msra.mxu0 0.0
    %2029 = vmatprep.subr.mxu0 0.0
    %2030 = vmatpush1.msra.mxu0 0.0
    %2031 = vmatprep.subr.mxu0 0.0
    %2032 = vmatpush1.msra.mxu0 0.0
    %2033 = vmatprep.subr.mxu0 0.0
    %2034 = vmatpush1.msra.mxu0 0.0
    %2035 = vmatprep.subr.mxu0 0.0
    %2036 = vmatpush1.msra.mxu0 0.0
    %2037 = vmatprep.subr.mxu0 0.0
    %2038 = vmatpush1.msra.mxu0 0.0
    %2039 = vmatprep.subr.mxu0 0.0
    %2040 = vmatpush1.msra.mxu0 0.0
    %2041 = vmatprep.subr.mxu0 0.0
    %2042 = vmatpush1.msra.mxu0 0.0
    %2043 = vmatprep.subr.mxu0 0.0
    %2044 = vmatpush1.msra.mxu0 0.0
    %2045 = vmatprep.subr.mxu0 0.0
    %2046 = vmatpush1.msra.mxu0 0.0
    %2047 = vmatprep.subr.mxu0 0.0
    %2048 = vmatpush1.msra.mxu0 0.0
    %2049 = vmatprep.subr.mxu0 0.0
    %2050 = vmatpush1.msra.mxu0 0.0
    %2051 = vmatprep.subr.mxu0 0.0
    %2052 = vmatpush1.msra.mxu0 0.0
    %2053 = vmatprep.subr.mxu0 0.0
    %2054 = vmatpush1.msra.mxu0 0.0
    %2055 = vmatprep.subr.mxu0 0.0
    %2056 = vmatpush1.msra.mxu0 0.0
    %2057 = vmatprep.subr.mxu0 0.0
    %2058 = vmatpush1.msra.mxu0 0.0
    %2059 = vmatprep.subr.mxu0 0.0
    %2060 = vmatpush1.msra.mxu0 0.0
    %2061 = vmatprep.subr.mxu0 0.0
    %2062 = vmatpush1.msra.mxu0 0.0
    %2063 = vmatprep.subr.mxu0 0.0
    %2064 = vmatpush1.msra.mxu0 0.0
    %2065 = vmatprep.subr.mxu0 0.0
    %2066 = vmatpush1.msra.mxu0 0.0
    %2067 = vmatprep.subr.mxu0 0.0
    %2068 = vmatpush1.msra.mxu0 0.0
    %2069 = vmatprep.subr.mxu0 0.0
    %2070 = vmatpush1.msra.mxu0 0.0
    %2071 = vmatprep.subr.mxu0 0.0
    %2072 = vmatpush1.msra.mxu0 0.0
    %2073 = vmatprep.mubr.f32.mxu0 0.0
    %2074 = vmatmul.mubr.f32.gmra.mrb[0].mxu0 %v2004
    %v2075 = vpop.f32.mrb[0].mxu0
    %v2076 = vadd.f32 %v1995, %v2075
    %v2077 = vpop.f32.mrb[0].mxu0
    %2078 = vmatprep.mubr.f32.mxu0 0.0
    %2079 = vmatmul.mubr.f32.gmra.mrb[0].mxu0 %v2007
    %v2080 = vpop.f32.mrb[0].mxu0
    %v2081 = vadd.f32 %v2000, %v2080
    %v2082 = vpop.f32.mrb[0].mxu0
    %2083 = vdwg.mxu0
    %2084 = vrot.lane.b32.xlu0 %v137, 64
    %v2085 = vpop.permute.xlu0 %2084
    %2086 = vrot.lane.b32.xlu0 %v142, 64
    %v2087 = vpop.permute.xlu0 %2086
    %2088 = vrot.lane.b32.xlu0 %v245, 64
    %v2089 = vpop.permute.xlu0 %2088
    %2090 = vrot.lane.b32.xlu0 %v250, 64
    %v2091 = vpop.permute.xlu0 %2090
    %v2092 = vsel %vm361, %v2085, 0
    %v2094 = vsel %vm361, %v2087, 0
    %v2096 = vsel %vm361, %v2089, 0
    %v2098 = vsel %vm361, %v2091, 0
    %2100 = vmatprep.subr.mxu0 0.0
    %2101 = vmatpush1.xpose.msra.mxu0 %v2096
    %2102 = vmatprep.subr.mxu0 0.0
    %2103 = vmatpush1.xpose.msra.mxu0 %v2098
    %2104 = vmatprep.subr.mxu0 0.0
    %2105 = vmatpush1.xpose.msra.mxu0 0.0
    %2106 = vmatprep.subr.mxu0 0.0
    %2107 = vmatpush1.xpose.msra.mxu0 0.0
    %2108 = vmatprep.subr.mxu0 0.0
    %2109 = vmatpush1.xpose.msra.mxu0 0.0
    %2110 = vmatprep.subr.mxu0 0.0
    %2111 = vmatpush1.xpose.msra.mxu0 0.0
    %2112 = vmatprep.subr.mxu0 0.0
    %2113 = vmatpush1.xpose.msra.mxu0 0.0
    %2114 = vmatprep.subr.mxu0 0.0
    %2115 = vmatpush1.xpose.msra.mxu0 0.0
    %2116 = vmatprep.subr.mxu0 0.0
    %2117 = vmatpush1.xpose.msra.mxu0 0.0
    %2118 = vmatprep.subr.mxu0 0.0
    %2119 = vmatpush1.xpose.msra.mxu0 0.0
    %2120 = vmatprep.subr.mxu0 0.0
    %2121 = vmatpush1.xpose.msra.mxu0 0.0
    %2122 = vmatprep.subr.mxu0 0.0
    %2123 = vmatpush1.xpose.msra.mxu0 0.0
    %2124 = vmatprep.subr.mxu0 0.0
    %2125 = vmatpush1.xpose.msra.mxu0 0.0
    %2126 = vmatprep.subr.mxu0 0.0
    %2127 = vmatpush1.xpose.msra.mxu0 0.0
    %2128 = vmatprep.subr.mxu0 0.0
    %2129 = vmatpush1.xpose.msra.mxu0 0.0
    %2130 = vmatprep.subr.mxu0 0.0
    %2131 = vmatpush1.xpose.msra.mxu0 0.0
    %2132 = vmatprep.subr.mxu0 0.0
    %2133 = vmatpush1.xpose.msra.mxu0 0.0
    %2134 = vmatprep.subr.mxu0 0.0
    %2135 = vmatpush1.xpose.msra.mxu0 0.0
    %2136 = vmatprep.subr.mxu0 0.0
    %2137 = vmatpush1.xpose.msra.mxu0 0.0
    %2138 = vmatprep.subr.mxu0 0.0
    %2139 = vmatpush1.xpose.msra.mxu0 0.0
    %2140 = vmatprep.subr.mxu0 0.0
    %2141 = vmatpush1.xpose.msra.mxu0 0.0
    %2142 = vmatprep.subr.mxu0 0.0
    %2143 = vmatpush1.xpose.msra.mxu0 0.0
    %2144 = vmatprep.subr.mxu0 0.0
    %2145 = vmatpush1.xpose.msra.mxu0 0.0
    %2146 = vmatprep.subr.mxu0 0.0
    %2147 = vmatpush1.xpose.msra.mxu0 0.0
    %2148 = vmatprep.subr.mxu0 0.0
    %2149 = vmatpush1.xpose.msra.mxu0 0.0
    %2150 = vmatprep.subr.mxu0 0.0
    %2151 = vmatpush1.xpose.msra.mxu0 0.0
    %2152 = vmatprep.subr.mxu0 0.0
    %2153 = vmatpush1.xpose.msra.mxu0 0.0
    %2154 = vmatprep.subr.mxu0 0.0
    %2155 = vmatpush1.xpose.msra.mxu0 0.0
    %2156 = vmatprep.subr.mxu0 0.0
    %2157 = vmatpush1.xpose.msra.mxu0 0.0
    %2158 = vmatprep.subr.mxu0 0.0
    %2159 = vmatpush1.xpose.msra.mxu0 0.0
    %2160 = vmatprep.subr.mxu0 0.0
    %2161 = vmatpush1.xpose.msra.mxu0 0.0
    %2162 = vmatprep.subr.mxu0 0.0
    %2163 = vmatpush1.xpose.msra.mxu0 0.0
    %2164 = vmatprep.mubr.f32.mxu0 0.0
    %2165 = vmatmul.mubr.f32.gmra.mrb[0].mxu0 %v2092
    %v2166 = vpop.f32.mrb[0].mxu0
    %v2167 = vadd.f32 0.0, %v2166
    %v2168 = vpop.f32.mrb[0].mxu0
    %2169 = vmatprep.mubr.f32.mxu0 0.0
    %2170 = vmatmul.mubr.f32.gmra.mrb[0].mxu0 %v2094
    %v2171 = vpop.f32.mrb[0].mxu0
    %v2172 = vadd.f32 0.0, %v2171
    %v2173 = vpop.f32.mrb[0].mxu0
    %2174 = vdwg.mxu0
    %v2175 = vmul.f32 %v2167, 0.17677669
    %v2176 = vmul.f32 %v2172, 0.17677669
    %v2177 = vsel %vm451, %v2175, -inf
    %2178 = vmax.xlane.f32.xlu0 %v2177
    %v2179 = vpop.xlane.xlu0 %2178
    %v2180 = vsel %vm451, %v2176, -inf
    %2181 = vmax.xlane.f32.xlu0 %v2180
    %v2182 = vpop.xlane.xlu0 %2181
    %v2183 = vsub.f32 %v2175, %v2179
    %v2184 = vsub.f32 %v2176, %v2182
    %v2185 = vmul.f32 %v2183, 1.442695
    %v2186 = vpow.pop %v2185
    %v2187 = vmul.f32 %v2184, 1.442695
    %v2188 = vpow.pop %v2187
    %v2189 = vsel %vm451, %v2186, 0.0
    %2190 = vadd.xlane.f32.xlu0 %v2189
    %v2191 = vpop.xlane.xlu0 %2190
    %v2192 = vsel %vm451, %v2188, 0.0
    %2193 = vadd.xlane.f32.xlu0 %v2192
    %v2194 = vpop.xlane.xlu0 %2193
    %v2195 = vrcp.pop %v2191
    %v2196 = vrcp.pop %v2194
    %v2197 = vmul.f32 %v2186, %v2195
    %v2198 = vmul.f32 %v2188, %v2196
    %2199 = vrot.lane.b32.xlu0 %v353, 64
    %v2200 = vpop.permute.xlu0 %2199
    %2201 = vrot.lane.b32.xlu0 %v358, 64
    %v2202 = vpop.permute.xlu0 %2201
    %v2206 = vsel %vm451, %v2197, 0
    %v2209 = vsel %vm451, %v2198, 0
    %2211 = vmatprep.subr.mxu0 0.0
    %2212 = vmatpush1.msra.mxu0 %v2200
    %2213 = vmatprep.subr.mxu0 0.0
    %2214 = vmatpush1.msra.mxu0 %v2202
    %2215 = vmatprep.subr.mxu0 0.0
    %2216 = vmatpush1.msra.mxu0 0.0
    %2217 = vmatprep.subr.mxu0 0.0
    %2218 = vmatpush1.msra.mxu0 0.0
    %2219 = vmatprep.subr.mxu0 0.0
    %2220 = vmatpush1.msra.mxu0 0.0
    %2221 = vmatprep.subr.mxu0 0.0
    %2222 = vmatpush1.msra.mxu0 0.0
    %2223 = vmatprep.subr.mxu0 0.0
    %2224 = vmatpush1.msra.mxu0 0.0
    %2225 = vmatprep.subr.mxu0 0.0
    %2226 = vmatpush1.msra.mxu0 0.0
    %2227 = vmatprep.subr.mxu0 0.0
    %2228 = vmatpush1.msra.mxu0 0.0
    %2229 = vmatprep.subr.mxu0 0.0
    %2230 = vmatpush1.msra.mxu0 0.0
    %2231 = vmatprep.subr.mxu0 0.0
    %2232 = vmatpush1.msra.mxu0 0.0
    %2233 = vmatprep.subr.mxu0 0.0
    %2234 = vmatpush1.msra.mxu0 0.0
    %2235 = vmatprep.subr.mxu0 0.0
    %2236 = vmatpush1.msra.mxu0 0.0
    %2237 = vmatprep.subr.mxu0 0.0
    %2238 = vmatpush1.msra.mxu0 0.0
    %2239 = vmatprep.subr.mxu0 0.0
    %2240 = vmatpush1.msra.mxu0 0.0
    %2241 = vmatprep.subr.mxu0 0.0
    %2242 = vmatpush1.msra.mxu0 0.0
    %2243 = vmatprep.subr.mxu0 0.0
    %2244 = vmatpush1.msra.mxu0 0.0
    %2245 = vmatprep.subr.mxu0 0.0
    %2246 = vmatpush1.msra.mxu0 0.0
    %2247 = vmatprep.subr.mxu0 0.0
    %2248 = vmatpush1.msra.mxu0 0.0
    %2249 = vmatprep.subr.mxu0 0.0
    %2250 = vmatpush1.msra.mxu0 0.0
    %2251 = vmatprep.subr.mxu0 0.0
    %2252 = vmatpush1.msra.mxu0 0.0
    %2253 = vmatprep.subr.mxu0 0.0
    %2254 = vmatpush1.msra.mxu0 0.0
    %2255 = vmatprep.subr.mxu0 0.0
    %2256 = vmatpush1.msra.mxu0 0.0
    %2257 = vmatprep.subr.mxu0 0.0
    %2258 = vmatpush1.msra.mxu0 0.0
    %2259 = vmatprep.subr.mxu0 0.0
    %2260 = vmatpush1.msra.mxu0 0.0
    %2261 = vmatprep.subr.mxu0 0.0
    %2262 = vmatpush1.msra.mxu0 0.0
    %2263 = vmatprep.subr.mxu0 0.0
    %2264 = vmatpush1.msra.mxu0 0.0
    %2265 = vmatprep.subr.mxu0 0.0
    %2266 = vmatpush1.msra.mxu0 0.0
    %2267 = vmatprep.subr.mxu0 0.0
    %2268 = vmatpush1.msra.mxu0 0.0
    %2269 = vmatprep.subr.mxu0 0.0
    %2270 = vmatpush1.msra.mxu0 0.0
    %2271 = vmatprep.subr.mxu0 0.0
    %2272 = vmatpush1.msra.mxu0 0.0
    %2273 = vmatprep.subr.mxu0 0.0
    %2274 = vmatpush1.msra.mxu0 0.0
    %2275 = vmatprep.mubr.f32.mxu0 0.0
    %2276 = vmatmul.mubr.f32.gmra.mrb[0].mxu0 %v2206
    %v2277 = vpop.f32.mrb[0].mxu0
    %v2278 = vadd.f32 0.0, %v2277
    %v2279 = vpop.f32.mrb[0].mxu0
    %2280 = vmatprep.mubr.f32.mxu0 0.0
    %2281 = vmatmul.mubr.f32.gmra.mrb[0].mxu0 %v2209
    %v2282 = vpop.f32.mrb[0].mxu0
    %v2283 = vadd.f32 0.0, %v2282
    %v2284 = vpop.f32.mrb[0].mxu0
    %2285 = vdwg.mxu0
    %v2286 = vld [vmem:[%s7 + $0x40] sm:$0xff]
    %v2287 = vld [vmem:[%s7 + $0x48] sm:$0xff]
    %v2288 = vld [vmem:[%s7 + $0x50] sm:$0xff]
    %v2289 = vld [vmem:[%s7 + $0x58] sm:$0xff]
    %v2291 = vsel %vm361, %v2278, 0
    %v2294 = vsel %vm361, %v2283, 0
    %2296 = vmatprep.subr.mxu0 0.0
    %2297 = vmatpush1.msra.mxu0 %v2286
    %2298 = vmatprep.subr.mxu0 0.0
    %2299 = vmatpush1.msra.mxu0 %v2287
    %2300 = vmatprep.subr.mxu0 0.0
    %2301 = vmatpush1.msra.mxu0 %v2288
    %2302 = vmatprep.subr.mxu0 0.0
    %2303 = vmatpush1.msra.mxu0 %v2289
    %2304 = vmatprep.subr.mxu0 0.0
    %2305 = vmatpush1.msra.mxu0 0.0
    %2306 = vmatprep.subr.mxu0 0.0
    %2307 = vmatpush1.msra.mxu0 0.0
    %2308 = vmatprep.subr.mxu0 0.0
    %2309 = vmatpush1.msra.mxu0 0.0
    %2310 = vmatprep.subr.mxu0 0.0
    %2311 = vmatpush1.msra.mxu0 0.0
    %2312 = vmatprep.subr.mxu0 0.0
    %2313 = vmatpush1.msra.mxu0 0.0
    %2314 = vmatprep.subr.mxu0 0.0
    %2315 = vmatpush1.msra.mxu0 0.0
    %2316 = vmatprep.subr.mxu0 0.0
    %2317 = vmatpush1.msra.mxu0 0.0
    %2318 = vmatprep.subr.mxu0 0.0
    %2319 = vmatpush1.msra.mxu0 0.0
    %2320 = vmatprep.subr.mxu0 0.0
    %2321 = vmatpush1.msra.mxu0 0.0
    %2322 = vmatprep.subr.mxu0 0.0
    %2323 = vmatpush1.msra.mxu0 0.0
    %2324 = vmatprep.subr.mxu0 0.0
    %2325 = vmatpush1.msra.mxu0 0.0
    %2326 = vmatprep.subr.mxu0 0.0
    %2327 = vmatpush1.msra.mxu0 0.0
    %2328 = vmatprep.subr.mxu0 0.0
    %2329 = vmatpush1.msra.mxu0 0.0
    %2330 = vmatprep.subr.mxu0 0.0
    %2331 = vmatpush1.msra.mxu0 0.0
    %2332 = vmatprep.subr.mxu0 0.0
    %2333 = vmatpush1.msra.mxu0 0.0
    %2334 = vmatprep.subr.mxu0 0.0
    %2335 = vmatpush1.msra.mxu0 0.0
    %2336 = vmatprep.subr.mxu0 0.0
    %2337 = vmatpush1.msra.mxu0 0.0
    %2338 = vmatprep.subr.mxu0 0.0
    %2339 = vmatpush1.msra.mxu0 0.0
    %2340 = vmatprep.subr.mxu0 0.0
    %2341 = vmatpush1.msra.mxu0 0.0
    %2342 = vmatprep.subr.mxu0 0.0
    %2343 = vmatpush1.msra.mxu0 0.0
    %2344 = vmatprep.subr.mxu0 0.0
    %2345 = vmatpush1.msra.mxu0 0.0
    %2346 = vmatprep.subr.mxu0 0.0
    %2347 = vmatpush1.msra.mxu0 0.0
    %2348 = vmatprep.subr.mxu0 0.0
    %2349 = vmatpush1.msra.mxu0 0.0
    %2350 = vmatprep.subr.mxu0 0.0
    %2351 = vmatpush1.msra.mxu0 0.0
    %2352 = vmatprep.subr.mxu0 0.0
    %2353 = vmatpush1.msra.mxu0 0.0
    %2354 = vmatprep.subr.mxu0 0.0
    %2355 = vmatpush1.msra.mxu0 0.0
    %2356 = vmatprep.subr.mxu0 0.0
    %2357 = vmatpush1.msra.mxu0 0.0
    %2358 = vmatprep.subr.mxu0 0.0
    %2359 = vmatpush1.msra.mxu0 0.0
    %2360 = vmatprep.mubr.f32.mxu0 0.0
    %2361 = vmatmul.mubr.f32.gmra.mrb[0].mxu0 %v2291
    %v2362 = vpop.f32.mrb[0].mxu0
    %v2363 = vadd.f32 0.0, %v2362
    %v2364 = vpop.f32.mrb[0].mxu0
    %2365 = vmatprep.mubr.f32.mxu0 0.0
    %2366 = vmatmul.mubr.f32.gmra.mrb[0].mxu0 %v2294
    %v2367 = vpop.f32.mrb[0].mxu0
    %v2368 = vadd.f32 0.0, %v2367
    %v2369 = vpop.f32.mrb[0].mxu0
    %2370 = vdwg.mxu0
    %v2371 = vadd.f32 %v2076, %v2363
    %v2372 = vadd.f32 %v2081, %v2368
    %2373 = vrot.lane.b32.xlu0 %v137, 32
    %v2374 = vpop.permute.xlu0 %2373
    %2375 = vrot.lane.b32.xlu0 %v142, 32
    %v2376 = vpop.permute.xlu0 %2375
    %2377 = vrot.lane.b32.xlu0 %v245, 32
    %v2378 = vpop.permute.xlu0 %2377
    %2379 = vrot.lane.b32.xlu0 %v250, 32
    %v2380 = vpop.permute.xlu0 %2379
    %v2381 = vsel %vm361, %v2374, 0
    %v2383 = vsel %vm361, %v2376, 0
    %v2385 = vsel %vm361, %v2378, 0
    %v2387 = vsel %vm361, %v2380, 0
    %2389 = vmatprep.subr.mxu0 0.0
    %2390 = vmatpush1.xpose.msra.mxu0 %v2385
    %2391 = vmatprep.subr.mxu0 0.0
    %2392 = vmatpush1.xpose.msra.mxu0 %v2387
    %2393 = vmatprep.subr.mxu0 0.0
    %2394 = vmatpush1.xpose.msra.mxu0 0.0
    %2395 = vmatprep.subr.mxu0 0.0
    %2396 = vmatpush1.xpose.msra.mxu0 0.0
    %2397 = vmatprep.subr.mxu0 0.0
    %2398 = vmatpush1.xpose.msra.mxu0 0.0
    %2399 = vmatprep.subr.mxu0 0.0
    %2400 = vmatpush1.xpose.msra.mxu0 0.0
    %2401 = vmatprep.subr.mxu0 0.0
    %2402 = vmatpush1.xpose.msra.mxu0 0.0
    %2403 = vmatprep.subr.mxu0 0.0
    %2404 = vmatpush1.xpose.msra.mxu0 0.0
    %2405 = vmatprep.subr.mxu0 0.0
    %2406 = vmatpush1.xpose.msra.mxu0 0.0
    %2407 = vmatprep.subr.mxu0 0.0
    %2408 = vmatpush1.xpose.msra.mxu0 0.0
    %2409 = vmatprep.subr.mxu0 0.0
    %2410 = vmatpush1.xpose.msra.mxu0 0.0
    %2411 = vmatprep.subr.mxu0 0.0
    %2412 = vmatpush1.xpose.msra.mxu0 0.0
    %2413 = vmatprep.subr.mxu0 0.0
    %2414 = vmatpush1.xpose.msra.mxu0 0.0
    %2415 = vmatprep.subr.mxu0 0.0
    %2416 = vmatpush1.xpose.msra.mxu0 0.0
    %2417 = vmatprep.subr.mxu0 0.0
    %2418 = vmatpush1.xpose.msra.mxu0 0.0
    %2419 = vmatprep.subr.mxu0 0.0
    %2420 = vmatpush1.xpose.msra.mxu0 0.0
    %2421 = vmatprep.subr.mxu0 0.0
    %2422 = vmatpush1.xpose.msra.mxu0 0.0
    %2423 = vmatprep.subr.mxu0 0.0
    %2424 = vmatpush1.xpose.msra.mxu0 0.0
    %2425 = vmatprep.subr.mxu0 0.0
    %2426 = vmatpush1.xpose.msra.mxu0 0.0
    %2427 = vmatprep.subr.mxu0 0.0
    %2428 = vmatpush1.xpose.msra.mxu0 0.0
    %2429 = vmatprep.subr.mxu0 0.0
    %2430 = vmatpush1.xpose.msra.mxu0 0.0
    %2431 = vmatprep.subr.mxu0 0.0
    %2432 = vmatpush1.xpose.msra.mxu0 0.0
    %2433 = vmatprep.subr.mxu0 0.0
    %2434 = vmatpush1.xpose.msra.mxu0 0.0
    %2435 = vmatprep.subr.mxu0 0.0
    %2436 = vmatpush1.xpose.msra.mxu0 0.0
    %2437 = vmatprep.subr.mxu0 0.0
    %2438 = vmatpush1.xpose.msra.mxu0 0.0
    %2439 = vmatprep.subr.mxu0 0.0
    %2440 = vmatpush1.xpose.msra.mxu0 0.0
    %2441 = vmatprep.subr.mxu0 0.0
    %2442 = vmatpush1.xpose.msra.mxu0 0.0
    %2443 = vmatprep.subr.mxu0 0.0
    %2444 = vmatpush1.xpose.msra.mxu0 0.0
    %2445 = vmatprep.subr.mxu0 0.0
    %2446 = vmatpush1.xpose.msra.mxu0 0.0
    %2447 = vmatprep.subr.mxu0 0.0
    %2448 = vmatpush1.xpose.msra.mxu0 0.0
    %2449 = vmatprep.subr.mxu0 0.0
    %2450 = vmatpush1.xpose.msra.mxu0 0.0
    %2451 = vmatprep.subr.mxu0 0.0
    %2452 = vmatpush1.xpose.msra.mxu0 0.0
    %2453 = vmatprep.mubr.f32.mxu0 0.0
    %2454 = vmatmul.mubr.f32.gmra.mrb[0].mxu0 %v2381
    %v2455 = vpop.f32.mrb[0].mxu0
    %v2456 = vadd.f32 0.0, %v2455
    %v2457 = vpop.f32.mrb[0].mxu0
    %2458 = vmatprep.mubr.f32.mxu0 0.0
    %2459 = vmatmul.mubr.f32.gmra.mrb[0].mxu0 %v2383
    %v2460 = vpop.f32.mrb[0].mxu0
    %v2461 = vadd.f32 0.0, %v2460
    %v2462 = vpop.f32.mrb[0].mxu0
    %2463 = vdwg.mxu0
    %v2464 = vmul.f32 %v2456, 0.17677669
    %v2465 = vmul.f32 %v2461, 0.17677669
    %v2466 = vsel %vm451, %v2464, -inf
    %2467 = vmax.xlane.f32.xlu0 %v2466
    %v2468 = vpop.xlane.xlu0 %2467
    %v2469 = vsel %vm451, %v2465, -inf
    %2470 = vmax.xlane.f32.xlu0 %v2469
    %v2471 = vpop.xlane.xlu0 %2470
    %v2472 = vsub.f32 %v2464, %v2468
    %v2473 = vsub.f32 %v2465, %v2471
    %v2474 = vmul.f32 %v2472, 1.442695
    %v2475 = vpow.pop %v2474
    %v2476 = vmul.f32 %v2473, 1.442695
    %v2477 = vpow.pop %v2476
    %v2478 = vsel %vm451, %v2475, 0.0
    %2479 = vadd.xlane.f32.xlu0 %v2478
    %v2480 = vpop.xlane.xlu0 %2479
    %v2481 = vsel %vm451, %v2477, 0.0
    %2482 = vadd.xlane.f32.xlu0 %v2481
    %v2483 = vpop.xlane.xlu0 %2482
    %v2484 = vrcp.pop %v2480
    %v2485 = vrcp.pop %v2483
    %v2486 = vmul.f32 %v2475, %v2484
    %v2487 = vmul.f32 %v2477, %v2485
    %2488 = vrot.lane.b32.xlu0 %v353, 32
    %v2489 = vpop.permute.xlu0 %2488
    %2490 = vrot.lane.b32.xlu0 %v358, 32
    %v2491 = vpop.permute.xlu0 %2490
    %v2495 = vsel %vm451, %v2486, 0
    %v2498 = vsel %vm451, %v2487, 0
    %2500 = vmatprep.subr.mxu0 0.0
    %2501 = vmatpush1.msra.mxu0 %v2489
    %2502 = vmatprep.subr.mxu0 0.0
    %2503 = vmatpush1.msra.mxu0 %v2491
    %2504 = vmatprep.subr.mxu0 0.0
    %2505 = vmatpush1.msra.mxu0 0.0
    %2506 = vmatprep.subr.mxu0 0.0
    %2507 = vmatpush1.msra.mxu0 0.0
    %2508 = vmatprep.subr.mxu0 0.0
    %2509 = vmatpush1.msra.mxu0 0.0
    %2510 = vmatprep.subr.mxu0 0.0
    %2511 = vmatpush1.msra.mxu0 0.0
    %2512 = vmatprep.subr.mxu0 0.0
    %2513 = vmatpush1.msra.mxu0 0.0
    %2514 = vmatprep.subr.mxu0 0.0
    %2515 = vmatpush1.msra.mxu0 0.0
    %2516 = vmatprep.subr.mxu0 0.0
    %2517 = vmatpush1.msra.mxu0 0.0
    %2518 = vmatprep.subr.mxu0 0.0
    %2519 = vmatpush1.msra.mxu0 0.0
    %2520 = vmatprep.subr.mxu0 0.0
    %2521 = vmatpush1.msra.mxu0 0.0
    %2522 = vmatprep.subr.mxu0 0.0
    %2523 = vmatpush1.msra.mxu0 0.0
    %2524 = vmatprep.subr.mxu0 0.0
    %2525 = vmatpush1.msra.mxu0 0.0
    %2526 = vmatprep.subr.mxu0 0.0
    %2527 = vmatpush1.msra.mxu0 0.0
    %2528 = vmatprep.subr.mxu0 0.0
    %2529 = vmatpush1.msra.mxu0 0.0
    %2530 = vmatprep.subr.mxu0 0.0
    %2531 = vmatpush1.msra.mxu0 0.0
    %2532 = vmatprep.subr.mxu0 0.0
    %2533 = vmatpush1.msra.mxu0 0.0
    %2534 = vmatprep.subr.mxu0 0.0
    %2535 = vmatpush1.msra.mxu0 0.0
    %2536 = vmatprep.subr.mxu0 0.0
    %2537 = vmatpush1.msra.mxu0 0.0
    %2538 = vmatprep.subr.mxu0 0.0
    %2539 = vmatpush1.msra.mxu0 0.0
    %2540 = vmatprep.subr.mxu0 0.0
    %2541 = vmatpush1.msra.mxu0 0.0
    %2542 = vmatprep.subr.mxu0 0.0
    %2543 = vmatpush1.msra.mxu0 0.0
    %2544 = vmatprep.subr.mxu0 0.0
    %2545 = vmatpush1.msra.mxu0 0.0
    %2546 = vmatprep.subr.mxu0 0.0
    %2547 = vmatpush1.msra.mxu0 0.0
    %2548 = vmatprep.subr.mxu0 0.0
    %2549 = vmatpush1.msra.mxu0 0.0
    %2550 = vmatprep.subr.mxu0 0.0
    %2551 = vmatpush1.msra.mxu0 0.0
    %2552 = vmatprep.subr.mxu0 0.0
    %2553 = vmatpush1.msra.mxu0 0.0
    %2554 = vmatprep.subr.mxu0 0.0
    %2555 = vmatpush1.msra.mxu0 0.0
    %2556 = vmatprep.subr.mxu0 0.0
    %2557 = vmatpush1.msra.mxu0 0.0
    %2558 = vmatprep.subr.mxu0 0.0
    %2559 = vmatpush1.msra.mxu0 0.0
    %2560 = vmatprep.subr.mxu0 0.0
    %2561 = vmatpush1.msra.mxu0 0.0
    %2562 = vmatprep.subr.mxu0 0.0
    %2563 = vmatpush1.msra.mxu0 0.0
    %2564 = vmatprep.mubr.f32.mxu0 0.0
    %2565 = vmatmul.mubr.f32.gmra.mrb[0].mxu0 %v2495
    %v2566 = vpop.f32.mrb[0].mxu0
    %v2567 = vadd.f32 0.0, %v2566
    %v2568 = vpop.f32.mrb[0].mxu0
    %2569 = vmatprep.mubr.f32.mxu0 0.0
    %2570 = vmatmul.mubr.f32.gmra.mrb[0].mxu0 %v2498
    %v2571 = vpop.f32.mrb[0].mxu0
    %v2572 = vadd.f32 0.0, %v2571
    %v2573 = vpop.f32.mrb[0].mxu0
    %2574 = vdwg.mxu0
    %v2575 = vld [vmem:[%s7 + $0x60] sm:$0xff]
    %v2576 = vld [vmem:[%s7 + $0x68] sm:$0xff]
    %v2577 = vld [vmem:[%s7 + $0x70] sm:$0xff]
    %v2578 = vld [vmem:[%s7 + $0x78] sm:$0xff]
    %v2580 = vsel %vm361, %v2567, 0
    %v2583 = vsel %vm361, %v2572, 0
    %2585 = vmatprep.subr.mxu0 0.0
    %2586 = vmatpush1.msra.mxu0 %v2575
    %2587 = vmatprep.subr.mxu0 0.0
    %2588 = vmatpush1.msra.mxu0 %v2576
    %2589 = vmatprep.subr.mxu0 0.0
    %2590 = vmatpush1.msra.mxu0 %v2577
    %2591 = vmatprep.subr.mxu0 0.0
    %2592 = vmatpush1.msra.mxu0 %v2578
    %2593 = vmatprep.subr.mxu0 0.0
    %2594 = vmatpush1.msra.mxu0 0.0
    %2595 = vmatprep.subr.mxu0 0.0
    %2596 = vmatpush1.msra.mxu0 0.0
    %2597 = vmatprep.subr.mxu0 0.0
    %2598 = vmatpush1.msra.mxu0 0.0
    %2599 = vmatprep.subr.mxu0 0.0
    %2600 = vmatpush1.msra.mxu0 0.0
    %2601 = vmatprep.subr.mxu0 0.0
    %2602 = vmatpush1.msra.mxu0 0.0
    %2603 = vmatprep.subr.mxu0 0.0
    %2604 = vmatpush1.msra.mxu0 0.0
    %2605 = vmatprep.subr.mxu0 0.0
    %2606 = vmatpush1.msra.mxu0 0.0
    %2607 = vmatprep.subr.mxu0 0.0
    %2608 = vmatpush1.msra.mxu0 0.0
    %2609 = vmatprep.subr.mxu0 0.0
    %2610 = vmatpush1.msra.mxu0 0.0
    %2611 = vmatprep.subr.mxu0 0.0
    %2612 = vmatpush1.msra.mxu0 0.0
    %2613 = vmatprep.subr.mxu0 0.0
    %2614 = vmatpush1.msra.mxu0 0.0
    %2615 = vmatprep.subr.mxu0 0.0
    %2616 = vmatpush1.msra.mxu0 0.0
    %2617 = vmatprep.subr.mxu0 0.0
    %2618 = vmatpush1.msra.mxu0 0.0
    %2619 = vmatprep.subr.mxu0 0.0
    %2620 = vmatpush1.msra.mxu0 0.0
    %2621 = vmatprep.subr.mxu0 0.0
    %2622 = vmatpush1.msra.mxu0 0.0
    %2623 = vmatprep.subr.mxu0 0.0
    %2624 = vmatpush1.msra.mxu0 0.0
    %2625 = vmatprep.subr.mxu0 0.0
    %2626 = vmatpush1.msra.mxu0 0.0
    %2627 = vmatprep.subr.mxu0 0.0
    %2628 = vmatpush1.msra.mxu0 0.0
    %2629 = vmatprep.subr.mxu0 0.0
    %2630 = vmatpush1.msra.mxu0 0.0
    %2631 = vmatprep.subr.mxu0 0.0
    %2632 = vmatpush1.msra.mxu0 0.0
    %2633 = vmatprep.subr.mxu0 0.0
    %2634 = vmatpush1.msra.mxu0 0.0
    %2635 = vmatprep.subr.mxu0 0.0
    %2636 = vmatpush1.msra.mxu0 0.0
    %2637 = vmatprep.subr.mxu0 0.0
    %2638 = vmatpush1.msra.mxu0 0.0
    %2639 = vmatprep.subr.mxu0 0.0
    %2640 = vmatpush1.msra.mxu0 0.0
    %2641 = vmatprep.subr.mxu0 0.0
    %2642 = vmatpush1.msra.mxu0 0.0
    %2643 = vmatprep.subr.mxu0 0.0
    %2644 = vmatpush1.msra.mxu0 0.0
    %2645 = vmatprep.subr.mxu0 0.0
    %2646 = vmatpush1.msra.mxu0 0.0
    %2647 = vmatprep.subr.mxu0 0.0
    %2648 = vmatpush1.msra.mxu0 0.0
    %2649 = vmatprep.mubr.f32.mxu0 0.0
    %2650 = vmatmul.mubr.f32.gmra.mrb[0].mxu0 %v2580
    %v2651 = vpop.f32.mrb[0].mxu0
    %v2652 = vadd.f32 0.0, %v2651
    %v2653 = vpop.f32.mrb[0].mxu0
    %2654 = vmatprep.mubr.f32.mxu0 0.0
    %2655 = vmatmul.mubr.f32.gmra.mrb[0].mxu0 %v2583
    %v2656 = vpop.f32.mrb[0].mxu0
    %v2657 = vadd.f32 0.0, %v2656
    %v2658 = vpop.f32.mrb[0].mxu0
    %2659 = vdwg.mxu0
    %v2660 = vadd.f32 %v2371, %v2652
    %v2661 = vadd.f32 %v2372, %v2657
    %v2662 = vld [vmem:[%s8] sm:$0x1]
    %v2664 = vlaneseq
    %v2665 = vshrl.u32 %v2664, 7
    %v2666 = vsub.s32 0, %v2665
    %v2667 = vrot.slane %v2662, %v2666
    %v2669 = vadd.f32 %v2660, %v2667
    %v2670 = vadd.f32 %v2661, %v2667
    %2671 = vst [vmem:[#allocation2 + $0x10] sm:$0xff] %v2669
    %2672 = vst [vmem:[#allocation2 + $0x18] sm:$0xff] %v2670
    // Predicated region
    $region38: #{my_multi_head_attention.1} parent=1 // pred_check
      _
    $region39: #{my_multi_head_attention.1} parent=1 // pred_check_branch
      %2674 = sbr.rel (0) target = $region41
    $region40: #{my_multi_head_attention.1} parent=1 // pred_region
      %s2676 = ssub.s32 512, 512
      %2677 = vsyncadd [#allocation3], %s2676
      %s2678 = sshll.u32 [#allocation2], 4
      %s2679 = int_to_ptr.vmem [resolvable:$true] %s2678
      %2684 = dma.vmem_to_hbm [thread:$0]  %s2679, 512, %s9, [#allocation3], 128, 128, 8
    $region41: #{my_multi_head_attention.1} parent=1 // pred_fallthru
      _
    // Predicated region
    $region42: #{my_multi_head_attention.1} parent=1 // pred_check
      _
    $region43: #{my_multi_head_attention.1} parent=1 // pred_check_branch
      %2686 = sbr.rel (0) target = $region45
    $region44: #{my_multi_head_attention.1} parent=1 // pred_region
      %2687 = dma.done [#allocation3], 512
    $region45: #{my_multi_head_attention.1} parent=1 // pred_fallthru
      _
    %2688 = vsyncpa [#allocation3], 1

</llo_original>
